<compile_context>
chip_gen: v7x
topology: tpu7x:2x2x1
jax: 0.10.0
libtpu: 0.0.40
codegen_flags: <defaults>
</compile_context>

<pallas_src>
import functools

import jax
import jax.numpy as jnp
from jax.experimental import pallas as pl
from jax.experimental.pallas import tpu as pltpu


def _round_up(n, m):
    return ((n + m - 1) // m) * m


def _pad2d(a, rows, cols):
    return jnp.pad(a, ((0, rows - a.shape[0]), (0, cols - a.shape[1])))


# ---------------------------------------------------------------------------
# Fused Pallas kernel: whole autoencoder forward on one batch tile.
#   refs = (x_ref, w0, b0, w1, b1, ..., w11, b11, o_ref)
# ReLU after every layer except: sigmoid after the encoder's last layer
# (index `sigmoid_idx`) and identity after the decoder's last layer.
# ---------------------------------------------------------------------------
def _ae_fused_kernel(*refs, sigmoid_idx):
    x_ref = refs[0]
    o_ref = refs[-1]
    param_refs = refs[1:-1]
    n_layers = len(param_refs) // 2

    h = x_ref[...]
    for li in range(n_layers):
        w = param_refs[2 * li][...]
        b = param_refs[2 * li + 1][...]
        y = jnp.dot(h, w, preferred_element_type=jnp.float32) + b
        if li == n_layers - 1:
            h = y                      # final decoder layer: no activation
        elif li == sigmoid_idx:
            h = jax.nn.sigmoid(y)      # encoder bottleneck (EUP path)
        else:
            h = jnp.maximum(y, 0.0)    # ReLU (VPU)
    o_ref[...] = h.astype(o_ref.dtype)


def ae_forward(params, x):
    """Fused autoencoder forward.  x: (B, x_dim) f32 -> (B, x_dim) f32."""
    layer_names = [
        "enc_fc1", "enc_fc2", "enc_fc3", "enc_fc4", "enc_fc5", "enc_fc6",
        "dec_fc6", "dec_fc5", "dec_fc4", "dec_fc3", "dec_fc2", "dec_fc1",
    ]

    B, x_dim = x.shape

    # --- Pad every feature dim to a lane multiple of 128 (zero padding is
    #     exact for this network; see header comment). -----------------------
    flat_params = []
    for name in layer_names:
        w, b = params[name]
        in_p = _round_up(w.shape[0], 128)
        out_p = _round_up(w.shape[1], 128)
        flat_params.append(_pad2d(w, in_p, out_p))
        flat_params.append(_pad2d(b, 1, out_p))

    x_dim_p = _round_up(x_dim, 128)
    out_dim_p = flat_params[-2].shape[1]  # padded x_dim

    # --- Pad batch to a sublane multiple of 8 and tile it. ------------------
    b_pad = _round_up(B, 8)
    tile_b = 256 if (b_pad >= 256 and b_pad % 256 == 0) else b_pad
    x = jnp.pad(x, ((0, b_pad - B), (0, x_dim_p - x_dim)))
    grid = (b_pad // tile_b,)

    # BlockSpecs: batch-tiled activations; whole-array, grid-invariant params.
    x_spec = pl.BlockSpec((tile_b, x_dim_p), lambda i: (i, 0))
    o_spec = pl.BlockSpec((tile_b, out_dim_p), lambda i: (i, 0))
    param_specs = [
        pl.BlockSpec(p.shape, lambda i: (0, 0)) for p in flat_params
    ]

    kernel = functools.partial(_ae_fused_kernel, sigmoid_idx=5)
    out = pl.pallas_call(
        kernel,
        out_shape=jax.ShapeDtypeStruct((b_pad, out_dim_p), jnp.float32),
        grid=grid,
        in_specs=[x_spec] + param_specs,
        out_specs=o_spec,
        compiler_params=pltpu.CompilerParams(
            dimension_semantics=("parallel",)),
    )(x, *flat_params)
    return out[:B, :x_dim]


# ---------------------------------------------------------------------------
# Parameter initialization (deterministic, PyTorch-Linear-style uniform)
# ---------------------------------------------------------------------------
def init_linear(key, in_dim, out_dim):
    kw, kb = jax.random.split(key)
    bound = 1.0 / jnp.sqrt(jnp.float32(in_dim))
    # Stored already transposed: (in, out)
    w = jax.random.uniform(kw, (in_dim, out_dim), jnp.float32, -bound, bound)
    b = jax.random.uniform(kb, (1, out_dim), jnp.float32, -bound, bound)
    return w, b


def init_ae_params(key, x_dim, h1, h2, h3, h4, h5, h6):
    keys = jax.random.split(key, 12)
    return {
        # Encoder
        "enc_fc1": init_linear(keys[0], x_dim, h1),
        "enc_fc2": init_linear(keys[1], h1, h2),
        "enc_fc3": init_linear(keys[2], h2, h3),
        "enc_fc4": init_linear(keys[3], h3, h4),
        "enc_fc5": init_linear(keys[4], h4, h5),
        "enc_fc6": init_linear(keys[5], h5, h6),
        # Decoder (Generator)
        "dec_fc6": init_linear(keys[6], h6, h5),
        "dec_fc5": init_linear(keys[7], h5, h4),
        "dec_fc4": init_linear(keys[8], h4, h3),
        "dec_fc3": init_linear(keys[9], h3, h2),
        "dec_fc2": init_linear(keys[10], h2, h1),
        "dec_fc1": init_linear(keys[11], h1, x_dim),
    }


# ---------------------------------------------------------------------------
# Pure-JAX reference (encoder -> sigmoid bottleneck -> decoder),
# corresponding to the h_dim4 > 0, h_dim5 > 0, h_dim6 > 0 path of the module.
# ---------------------------------------------------------------------------
def ae_forward_ref(params, x):
    def lin(h, p, act):
        w, b = p
        y = h @ w + b
        if act == "relu":
            return jnp.maximum(y, 0.0)
        if act == "sigmoid":
            return jax.nn.sigmoid(y)
        return y

    h = lin(x, params["enc_fc1"], "relu")
    h = lin(h, params["enc_fc2"], "relu")
    h = lin(h, params["enc_fc3"], "relu")
    h = lin(h, params["enc_fc4"], "relu")
    h = lin(h, params["enc_fc5"], "relu")
    z = lin(h, params["enc_fc6"], "sigmoid")
    h = lin(z, params["dec_fc6"], "relu")
    h = lin(h, params["dec_fc5"], "relu")
    h = lin(h, params["dec_fc4"], "relu")
    h = lin(h, params["dec_fc3"], "relu")
    h = lin(h, params["dec_fc2"], "relu")
    return lin(h, params["dec_fc1"], "none")


if __name__ == "__main__":
    # Small dims consistent with the module's Linear stack.
    batch = 4
    x_dim, h1, h2, h3, h4, h5, h6 = 32, 64, 48, 32, 24, 16, 8

    key = jax.random.PRNGKey(0)
    pkey, xkey = jax.random.split(key)
    params = init_ae_params(pkey, x_dim, h1, h2, h3, h4, h5, h6)
    x = jax.random.normal(xkey, (batch, x_dim), jnp.float32)

    out = jax.block_until_ready(ae_forward(params, x))
    ref = jax.block_until_ready(ae_forward_ref(params, x))

    assert out.shape == (batch, x_dim)
    assert jnp.allclose(out, ref, atol=1e-5, rtol=1e-5)
    print("KERNEL_OK")
</pallas_src>

<mosaic_0001>
module attributes {stable_mosaic.version = 11 : i64} {
  func.func @_ae_fused_kernel(%arg0: i32, %arg1: memref<8x128xf32, #tpu.memory_space<vmem>>, %arg2: memref<128x128xf32, #tpu.memory_space<vmem>>, %arg3: memref<1x128xf32, #tpu.memory_space<vmem>>, %arg4: memref<128x128xf32, #tpu.memory_space<vmem>>, %arg5: memref<1x128xf32, #tpu.memory_space<vmem>>, %arg6: memref<128x128xf32, #tpu.memory_space<vmem>>, %arg7: memref<1x128xf32, #tpu.memory_space<vmem>>, %arg8: memref<128x128xf32, #tpu.memory_space<vmem>>, %arg9: memref<1x128xf32, #tpu.memory_space<vmem>>, %arg10: memref<128x128xf32, #tpu.memory_space<vmem>>, %arg11: memref<1x128xf32, #tpu.memory_space<vmem>>, %arg12: memref<128x128xf32, #tpu.memory_space<vmem>>, %arg13: memref<1x128xf32, #tpu.memory_space<vmem>>, %arg14: memref<128x128xf32, #tpu.memory_space<vmem>>, %arg15: memref<1x128xf32, #tpu.memory_space<vmem>>, %arg16: memref<128x128xf32, #tpu.memory_space<vmem>>, %arg17: memref<1x128xf32, #tpu.memory_space<vmem>>, %arg18: memref<128x128xf32, #tpu.memory_space<vmem>>, %arg19: memref<1x128xf32, #tpu.memory_space<vmem>>, %arg20: memref<128x128xf32, #tpu.memory_space<vmem>>, %arg21: memref<1x128xf32, #tpu.memory_space<vmem>>, %arg22: memref<128x128xf32, #tpu.memory_space<vmem>>, %arg23: memref<1x128xf32, #tpu.memory_space<vmem>>, %arg24: memref<128x128xf32, #tpu.memory_space<vmem>>, %arg25: memref<1x128xf32, #tpu.memory_space<vmem>>, %arg26: memref<8x128xf32, #tpu.memory_space<vmem>>) attributes {dimension_semantics = [#tpu.dimension_semantics<parallel>], iteration_bounds = array<i64: 1>, scalar_prefetch = 0 : i64, scratch_operands = 0 : i64, tpu.core_type = #tpu.core_type<tc>, window_params = [{transform_indices = @transform_0, window_bounds = array<i64: 8, 128>}, {pipeline_mode = #tpu.pipeline_mode<synchronous>, transform_indices = @transform_1, window_bounds = array<i64: 128, 128>}, {pipeline_mode = #tpu.pipeline_mode<synchronous>, transform_indices = @transform_2, window_bounds = array<i64: 1, 128>}, {pipeline_mode = #tpu.pipeline_mode<synchronous>, transform_indices = @transform_3, window_bounds = array<i64: 128, 128>}, {pipeline_mode = #tpu.pipeline_mode<synchronous>, transform_indices = @transform_4, window_bounds = array<i64: 1, 128>}, {pipeline_mode = #tpu.pipeline_mode<synchronous>, transform_indices = @transform_5, window_bounds = array<i64: 128, 128>}, {pipeline_mode = #tpu.pipeline_mode<synchronous>, transform_indices = @transform_6, window_bounds = array<i64: 1, 128>}, {pipeline_mode = #tpu.pipeline_mode<synchronous>, transform_indices = @transform_7, window_bounds = array<i64: 128, 128>}, {pipeline_mode = #tpu.pipeline_mode<synchronous>, transform_indices = @transform_8, window_bounds = array<i64: 1, 128>}, {pipeline_mode = #tpu.pipeline_mode<synchronous>, transform_indices = @transform_9, window_bounds = array<i64: 128, 128>}, {pipeline_mode = #tpu.pipeline_mode<synchronous>, transform_indices = @transform_10, window_bounds = array<i64: 1, 128>}, {pipeline_mode = #tpu.pipeline_mode<synchronous>, transform_indices = @transform_11, window_bounds = array<i64: 128, 128>}, {pipeline_mode = #tpu.pipeline_mode<synchronous>, transform_indices = @transform_12, window_bounds = array<i64: 1, 128>}, {pipeline_mode = #tpu.pipeline_mode<synchronous>, transform_indices = @transform_13, window_bounds = array<i64: 128, 128>}, {pipeline_mode = #tpu.pipeline_mode<synchronous>, transform_indices = @transform_14, window_bounds = array<i64: 1, 128>}, {pipeline_mode = #tpu.pipeline_mode<synchronous>, transform_indices = @transform_15, window_bounds = array<i64: 128, 128>}, {pipeline_mode = #tpu.pipeline_mode<synchronous>, transform_indices = @transform_16, window_bounds = array<i64: 1, 128>}, {pipeline_mode = #tpu.pipeline_mode<synchronous>, transform_indices = @transform_17, window_bounds = array<i64: 128, 128>}, {pipeline_mode = #tpu.pipeline_mode<synchronous>, transform_indices = @transform_18, window_bounds = array<i64: 1, 128>}, {pipeline_mode = #tpu.pipeline_mode<synchronous>, transform_indices = @transform_19, window_bounds = array<i64: 128, 128>}, {pipeline_mode = #tpu.pipeline_mode<synchronous>, transform_indices = @transform_20, window_bounds = array<i64: 1, 128>}, {pipeline_mode = #tpu.pipeline_mode<synchronous>, transform_indices = @transform_21, window_bounds = array<i64: 128, 128>}, {pipeline_mode = #tpu.pipeline_mode<synchronous>, transform_indices = @transform_22, window_bounds = array<i64: 1, 128>}, {pipeline_mode = #tpu.pipeline_mode<synchronous>, transform_indices = @transform_23, window_bounds = array<i64: 128, 128>}, {pipeline_mode = #tpu.pipeline_mode<synchronous>, transform_indices = @transform_24, window_bounds = array<i64: 1, 128>}, {transform_indices = @transform_25, window_bounds = array<i64: 8, 128>}]} {
    %c0 = arith.constant 0 : index
    %c0_0 = arith.constant 0 : index
    %0 = vector.load %arg1[%c0, %c0_0] : memref<8x128xf32, #tpu.memory_space<vmem>>, vector<8x128xf32>
    %c0_1 = arith.constant 0 : index
    %c0_2 = arith.constant 0 : index
    %1 = vector.load %arg2[%c0_1, %c0_2] : memref<128x128xf32, #tpu.memory_space<vmem>>, vector<128x128xf32>
    %c0_3 = arith.constant 0 : index
    %c0_4 = arith.constant 0 : index
    %2 = vector.load %arg3[%c0_3, %c0_4] : memref<1x128xf32, #tpu.memory_space<vmem>>, vector<1x128xf32>
    %cst = arith.constant dense<0.000000e+00> : vector<8x128xf32>
    %3 = tpu.matmul %0, %1, %cst {dimension_numbers = #tpu.dot_dimension_numbers<[1], [0], [0], [1], [0, 0, 1, 1], [], []>} : vector<8x128xf32>, vector<128x128xf32>, vector<8x128xf32> -> vector<8x128xf32>
    %4 = vector.broadcast %2 : vector<1x128xf32> to vector<8x128xf32>
    %5 = arith.addf %3, %4 : vector<8x128xf32>
    %cst_5 = arith.constant 0.000000e+00 : f32
    %6 = vector.broadcast %cst_5 : f32 to vector<8x128xf32>
    %7 = arith.maximumf %5, %6 : vector<8x128xf32>
    %c0_6 = arith.constant 0 : index
    %c0_7 = arith.constant 0 : index
    %8 = vector.load %arg4[%c0_6, %c0_7] : memref<128x128xf32, #tpu.memory_space<vmem>>, vector<128x128xf32>
    %c0_8 = arith.constant 0 : index
    %c0_9 = arith.constant 0 : index
    %9 = vector.load %arg5[%c0_8, %c0_9] : memref<1x128xf32, #tpu.memory_space<vmem>>, vector<1x128xf32>
    %cst_10 = arith.constant dense<0.000000e+00> : vector<8x128xf32>
    %10 = tpu.matmul %7, %8, %cst_10 {dimension_numbers = #tpu.dot_dimension_numbers<[1], [0], [0], [1], [0, 0, 1, 1], [], []>} : vector<8x128xf32>, vector<128x128xf32>, vector<8x128xf32> -> vector<8x128xf32>
    %11 = vector.broadcast %9 : vector<1x128xf32> to vector<8x128xf32>
    %12 = arith.addf %10, %11 : vector<8x128xf32>
    %cst_11 = arith.constant 0.000000e+00 : f32
    %13 = vector.broadcast %cst_11 : f32 to vector<8x128xf32>
    %14 = arith.maximumf %12, %13 : vector<8x128xf32>
    %c0_12 = arith.constant 0 : index
    %c0_13 = arith.constant 0 : index
    %15 = vector.load %arg6[%c0_12, %c0_13] : memref<128x128xf32, #tpu.memory_space<vmem>>, vector<128x128xf32>
    %c0_14 = arith.constant 0 : index
    %c0_15 = arith.constant 0 : index
    %16 = vector.load %arg7[%c0_14, %c0_15] : memref<1x128xf32, #tpu.memory_space<vmem>>, vector<1x128xf32>
    %cst_16 = arith.constant dense<0.000000e+00> : vector<8x128xf32>
    %17 = tpu.matmul %14, %15, %cst_16 {dimension_numbers = #tpu.dot_dimension_numbers<[1], [0], [0], [1], [0, 0, 1, 1], [], []>} : vector<8x128xf32>, vector<128x128xf32>, vector<8x128xf32> -> vector<8x128xf32>
    %18 = vector.broadcast %16 : vector<1x128xf32> to vector<8x128xf32>
    %19 = arith.addf %17, %18 : vector<8x128xf32>
    %cst_17 = arith.constant 0.000000e+00 : f32
    %20 = vector.broadcast %cst_17 : f32 to vector<8x128xf32>
    %21 = arith.maximumf %19, %20 : vector<8x128xf32>
    %c0_18 = arith.constant 0 : index
    %c0_19 = arith.constant 0 : index
    %22 = vector.load %arg8[%c0_18, %c0_19] : memref<128x128xf32, #tpu.memory_space<vmem>>, vector<128x128xf32>
    %c0_20 = arith.constant 0 : index
    %c0_21 = arith.constant 0 : index
    %23 = vector.load %arg9[%c0_20, %c0_21] : memref<1x128xf32, #tpu.memory_space<vmem>>, vector<1x128xf32>
    %cst_22 = arith.constant dense<0.000000e+00> : vector<8x128xf32>
    %24 = tpu.matmul %21, %22, %cst_22 {dimension_numbers = #tpu.dot_dimension_numbers<[1], [0], [0], [1], [0, 0, 1, 1], [], []>} : vector<8x128xf32>, vector<128x128xf32>, vector<8x128xf32> -> vector<8x128xf32>
    %25 = vector.broadcast %23 : vector<1x128xf32> to vector<8x128xf32>
    %26 = arith.addf %24, %25 : vector<8x128xf32>
    %cst_23 = arith.constant 0.000000e+00 : f32
    %27 = vector.broadcast %cst_23 : f32 to vector<8x128xf32>
    %28 = arith.maximumf %26, %27 : vector<8x128xf32>
    %c0_24 = arith.constant 0 : index
    %c0_25 = arith.constant 0 : index
    %29 = vector.load %arg10[%c0_24, %c0_25] : memref<128x128xf32, #tpu.memory_space<vmem>>, vector<128x128xf32>
    %c0_26 = arith.constant 0 : index
    %c0_27 = arith.constant 0 : index
    %30 = vector.load %arg11[%c0_26, %c0_27] : memref<1x128xf32, #tpu.memory_space<vmem>>, vector<1x128xf32>
    %cst_28 = arith.constant dense<0.000000e+00> : vector<8x128xf32>
    %31 = tpu.matmul %28, %29, %cst_28 {dimension_numbers = #tpu.dot_dimension_numbers<[1], [0], [0], [1], [0, 0, 1, 1], [], []>} : vector<8x128xf32>, vector<128x128xf32>, vector<8x128xf32> -> vector<8x128xf32>
    %32 = vector.broadcast %30 : vector<1x128xf32> to vector<8x128xf32>
    %33 = arith.addf %31, %32 : vector<8x128xf32>
    %cst_29 = arith.constant 0.000000e+00 : f32
    %34 = vector.broadcast %cst_29 : f32 to vector<8x128xf32>
    %35 = arith.maximumf %33, %34 : vector<8x128xf32>
    %c0_30 = arith.constant 0 : index
    %c0_31 = arith.constant 0 : index
    %36 = vector.load %arg12[%c0_30, %c0_31] : memref<128x128xf32, #tpu.memory_space<vmem>>, vector<128x128xf32>
    %c0_32 = arith.constant 0 : index
    %c0_33 = arith.constant 0 : index
    %37 = vector.load %arg13[%c0_32, %c0_33] : memref<1x128xf32, #tpu.memory_space<vmem>>, vector<1x128xf32>
    %cst_34 = arith.constant dense<0.000000e+00> : vector<8x128xf32>
    %38 = tpu.matmul %35, %36, %cst_34 {dimension_numbers = #tpu.dot_dimension_numbers<[1], [0], [0], [1], [0, 0, 1, 1], [], []>} : vector<8x128xf32>, vector<128x128xf32>, vector<8x128xf32> -> vector<8x128xf32>
    %39 = vector.broadcast %37 : vector<1x128xf32> to vector<8x128xf32>
    %40 = arith.addf %38, %39 : vector<8x128xf32>
    %41 = arith.negf %40 : vector<8x128xf32>
    %42 = math.exp %41 : vector<8x128xf32>
    %cst_35 = arith.constant 1.000000e+00 : f32
    %43 = vector.broadcast %cst_35 : f32 to vector<8x128xf32>
    %44 = arith.addf %43, %42 : vector<8x128xf32>
    %45 = arith.divf %43, %44 : vector<8x128xf32>
    %c0_36 = arith.constant 0 : index
    %c0_37 = arith.constant 0 : index
    %46 = vector.load %arg14[%c0_36, %c0_37] : memref<128x128xf32, #tpu.memory_space<vmem>>, vector<128x128xf32>
    %c0_38 = arith.constant 0 : index
    %c0_39 = arith.constant 0 : index
    %47 = vector.load %arg15[%c0_38, %c0_39] : memref<1x128xf32, #tpu.memory_space<vmem>>, vector<1x128xf32>
    %cst_40 = arith.constant dense<0.000000e+00> : vector<8x128xf32>
    %48 = tpu.matmul %45, %46, %cst_40 {dimension_numbers = #tpu.dot_dimension_numbers<[1], [0], [0], [1], [0, 0, 1, 1], [], []>} : vector<8x128xf32>, vector<128x128xf32>, vector<8x128xf32> -> vector<8x128xf32>
    %49 = vector.broadcast %47 : vector<1x128xf32> to vector<8x128xf32>
    %50 = arith.addf %48, %49 : vector<8x128xf32>
    %cst_41 = arith.constant 0.000000e+00 : f32
    %51 = vector.broadcast %cst_41 : f32 to vector<8x128xf32>
    %52 = arith.maximumf %50, %51 : vector<8x128xf32>
    %c0_42 = arith.constant 0 : index
    %c0_43 = arith.constant 0 : index
    %53 = vector.load %arg16[%c0_42, %c0_43] : memref<128x128xf32, #tpu.memory_space<vmem>>, vector<128x128xf32>
    %c0_44 = arith.constant 0 : index
    %c0_45 = arith.constant 0 : index
    %54 = vector.load %arg17[%c0_44, %c0_45] : memref<1x128xf32, #tpu.memory_space<vmem>>, vector<1x128xf32>
    %cst_46 = arith.constant dense<0.000000e+00> : vector<8x128xf32>
    %55 = tpu.matmul %52, %53, %cst_46 {dimension_numbers = #tpu.dot_dimension_numbers<[1], [0], [0], [1], [0, 0, 1, 1], [], []>} : vector<8x128xf32>, vector<128x128xf32>, vector<8x128xf32> -> vector<8x128xf32>
    %56 = vector.broadcast %54 : vector<1x128xf32> to vector<8x128xf32>
    %57 = arith.addf %55, %56 : vector<8x128xf32>
    %cst_47 = arith.constant 0.000000e+00 : f32
    %58 = vector.broadcast %cst_47 : f32 to vector<8x128xf32>
    %59 = arith.maximumf %57, %58 : vector<8x128xf32>
    %c0_48 = arith.constant 0 : index
    %c0_49 = arith.constant 0 : index
    %60 = vector.load %arg18[%c0_48, %c0_49] : memref<128x128xf32, #tpu.memory_space<vmem>>, vector<128x128xf32>
    %c0_50 = arith.constant 0 : index
    %c0_51 = arith.constant 0 : index
    %61 = vector.load %arg19[%c0_50, %c0_51] : memref<1x128xf32, #tpu.memory_space<vmem>>, vector<1x128xf32>
    %cst_52 = arith.constant dense<0.000000e+00> : vector<8x128xf32>
    %62 = tpu.matmul %59, %60, %cst_52 {dimension_numbers = #tpu.dot_dimension_numbers<[1], [0], [0], [1], [0, 0, 1, 1], [], []>} : vector<8x128xf32>, vector<128x128xf32>, vector<8x128xf32> -> vector<8x128xf32>
    %63 = vector.broadcast %61 : vector<1x128xf32> to vector<8x128xf32>
    %64 = arith.addf %62, %63 : vector<8x128xf32>
    %cst_53 = arith.constant 0.000000e+00 : f32
    %65 = vector.broadcast %cst_53 : f32 to vector<8x128xf32>
    %66 = arith.maximumf %64, %65 : vector<8x128xf32>
    %c0_54 = arith.constant 0 : index
    %c0_55 = arith.constant 0 : index
    %67 = vector.load %arg20[%c0_54, %c0_55] : memref<128x128xf32, #tpu.memory_space<vmem>>, vector<128x128xf32>
    %c0_56 = arith.constant 0 : index
    %c0_57 = arith.constant 0 : index
    %68 = vector.load %arg21[%c0_56, %c0_57] : memref<1x128xf32, #tpu.memory_space<vmem>>, vector<1x128xf32>
    %cst_58 = arith.constant dense<0.000000e+00> : vector<8x128xf32>
    %69 = tpu.matmul %66, %67, %cst_58 {dimension_numbers = #tpu.dot_dimension_numbers<[1], [0], [0], [1], [0, 0, 1, 1], [], []>} : vector<8x128xf32>, vector<128x128xf32>, vector<8x128xf32> -> vector<8x128xf32>
    %70 = vector.broadcast %68 : vector<1x128xf32> to vector<8x128xf32>
    %71 = arith.addf %69, %70 : vector<8x128xf32>
    %cst_59 = arith.constant 0.000000e+00 : f32
    %72 = vector.broadcast %cst_59 : f32 to vector<8x128xf32>
    %73 = arith.maximumf %71, %72 : vector<8x128xf32>
    %c0_60 = arith.constant 0 : index
    %c0_61 = arith.constant 0 : index
    %74 = vector.load %arg22[%c0_60, %c0_61] : memref<128x128xf32, #tpu.memory_space<vmem>>, vector<128x128xf32>
    %c0_62 = arith.constant 0 : index
    %c0_63 = arith.constant 0 : index
    %75 = vector.load %arg23[%c0_62, %c0_63] : memref<1x128xf32, #tpu.memory_space<vmem>>, vector<1x128xf32>
    %cst_64 = arith.constant dense<0.000000e+00> : vector<8x128xf32>
    %76 = tpu.matmul %73, %74, %cst_64 {dimension_numbers = #tpu.dot_dimension_numbers<[1], [0], [0], [1], [0, 0, 1, 1], [], []>} : vector<8x128xf32>, vector<128x128xf32>, vector<8x128xf32> -> vector<8x128xf32>
    %77 = vector.broadcast %75 : vector<1x128xf32> to vector<8x128xf32>
    %78 = arith.addf %76, %77 : vector<8x128xf32>
    %cst_65 = arith.constant 0.000000e+00 : f32
    %79 = vector.broadcast %cst_65 : f32 to vector<8x128xf32>
    %80 = arith.maximumf %78, %79 : vector<8x128xf32>
    %c0_66 = arith.constant 0 : index
    %c0_67 = arith.constant 0 : index
    %81 = vector.load %arg24[%c0_66, %c0_67] : memref<128x128xf32, #tpu.memory_space<vmem>>, vector<128x128xf32>
    %c0_68 = arith.constant 0 : index
    %c0_69 = arith.constant 0 : index
    %82 = vector.load %arg25[%c0_68, %c0_69] : memref<1x128xf32, #tpu.memory_space<vmem>>, vector<1x128xf32>
    %cst_70 = arith.constant dense<0.000000e+00> : vector<8x128xf32>
    %83 = tpu.matmul %80, %81, %cst_70 {dimension_numbers = #tpu.dot_dimension_numbers<[1], [0], [0], [1], [0, 0, 1, 1], [], []>} : vector<8x128xf32>, vector<128x128xf32>, vector<8x128xf32> -> vector<8x128xf32>
    %84 = vector.broadcast %82 : vector<1x128xf32> to vector<8x128xf32>
    %85 = arith.addf %83, %84 : vector<8x128xf32>
    %c0_71 = arith.constant 0 : index
    %c0_72 = arith.constant 0 : index
    %86 = vector.load %arg26[%c0_71, %c0_72] : memref<8x128xf32, #tpu.memory_space<vmem>>, vector<8x128xf32>
    tpu.vector_store %arg26[%c0_71, %c0_72], %85 {strides = array<i32>} : memref<8x128xf32, #tpu.memory_space<vmem>>, vector<8x128xf32>,
    return
  }
  func.func @transform_0(%arg0: i32) -> (i32, i32) {
    %c0_i32 = arith.constant 0 : i32
    %c0_i32_0 = arith.constant 0 : i32
    return %arg0, %c0_i32 : i32, i32
  }
  func.func @transform_1(%arg0: i32) -> (i32, i32) {
    %c0_i32 = arith.constant 0 : i32
    %c0_i32_0 = arith.constant 0 : i32
    %c0_i32_1 = arith.constant 0 : i32
    return %c0_i32, %c0_i32_0 : i32, i32
  }
  func.func @transform_2(%arg0: i32) -> (i32, i32) {
    %c0_i32 = arith.constant 0 : i32
    %c0_i32_0 = arith.constant 0 : i32
    %c0_i32_1 = arith.constant 0 : i32
    return %c0_i32, %c0_i32_0 : i32, i32
  }
  func.func @transform_3(%arg0: i32) -> (i32, i32) {
    %c0_i32 = arith.constant 0 : i32
    %c0_i32_0 = arith.constant 0 : i32
    %c0_i32_1 = arith.constant 0 : i32
    return %c0_i32, %c0_i32_0 : i32, i32
  }
  func.func @transform_4(%arg0: i32) -> (i32, i32) {
    %c0_i32 = arith.constant 0 : i32
    %c0_i32_0 = arith.constant 0 : i32
    %c0_i32_1 = arith.constant 0 : i32
    return %c0_i32, %c0_i32_0 : i32, i32
  }
  func.func @transform_5(%arg0: i32) -> (i32, i32) {
    %c0_i32 = arith.constant 0 : i32
    %c0_i32_0 = arith.constant 0 : i32
    %c0_i32_1 = arith.constant 0 : i32
    return %c0_i32, %c0_i32_0 : i32, i32
  }
  func.func @transform_6(%arg0: i32) -> (i32, i32) {
    %c0_i32 = arith.constant 0 : i32
    %c0_i32_0 = arith.constant 0 : i32
    %c0_i32_1 = arith.constant 0 : i32
    return %c0_i32, %c0_i32_0 : i32, i32
  }
  func.func @transform_7(%arg0: i32) -> (i32, i32) {
    %c0_i32 = arith.constant 0 : i32
    %c0_i32_0 = arith.constant 0 : i32
    %c0_i32_1 = arith.constant 0 : i32
    return %c0_i32, %c0_i32_0 : i32, i32
  }
  func.func @transform_8(%arg0: i32) -> (i32, i32) {
    %c0_i32 = arith.constant 0 : i32
    %c0_i32_0 = arith.constant 0 : i32
    %c0_i32_1 = arith.constant 0 : i32
    return %c0_i32, %c0_i32_0 : i32, i32
  }
  func.func @transform_9(%arg0: i32) -> (i32, i32) {
    %c0_i32 = arith.constant 0 : i32
    %c0_i32_0 = arith.constant 0 : i32
    %c0_i32_1 = arith.constant 0 : i32
    return %c0_i32, %c0_i32_0 : i32, i32
  }
  func.func @transform_10(%arg0: i32) -> (i32, i32) {
    %c0_i32 = arith.constant 0 : i32
    %c0_i32_0 = arith.constant 0 : i32
    %c0_i32_1 = arith.constant 0 : i32
    return %c0_i32, %c0_i32_0 : i32, i32
  }
  func.func @transform_11(%arg0: i32) -> (i32, i32) {
    %c0_i32 = arith.constant 0 : i32
    %c0_i32_0 = arith.constant 0 : i32
    %c0_i32_1 = arith.constant 0 : i32
    return %c0_i32, %c0_i32_0 : i32, i32
  }
  func.func @transform_12(%arg0: i32) -> (i32, i32) {
    %c0_i32 = arith.constant 0 : i32
    %c0_i32_0 = arith.constant 0 : i32
    %c0_i32_1 = arith.constant 0 : i32
    return %c0_i32, %c0_i32_0 : i32, i32
  }
  func.func @transform_13(%arg0: i32) -> (i32, i32) {
    %c0_i32 = arith.constant 0 : i32
    %c0_i32_0 = arith.constant 0 : i32
    %c0_i32_1 = arith.constant 0 : i32
    return %c0_i32, %c0_i32_0 : i32, i32
  }
  func.func @transform_14(%arg0: i32) -> (i32, i32) {
    %c0_i32 = arith.constant 0 : i32
    %c0_i32_0 = arith.constant 0 : i32
    %c0_i32_1 = arith.constant 0 : i32
    return %c0_i32, %c0_i32_0 : i32, i32
  }
  func.func @transform_15(%arg0: i32) -> (i32, i32) {
    %c0_i32 = arith.constant 0 : i32
    %c0_i32_0 = arith.constant 0 : i32
    %c0_i32_1 = arith.constant 0 : i32
    return %c0_i32, %c0_i32_0 : i32, i32
  }
  func.func @transform_16(%arg0: i32) -> (i32, i32) {
    %c0_i32 = arith.constant 0 : i32
    %c0_i32_0 = arith.constant 0 : i32
    %c0_i32_1 = arith.constant 0 : i32
    return %c0_i32, %c0_i32_0 : i32, i32
  }
  func.func @transform_17(%arg0: i32) -> (i32, i32) {
    %c0_i32 = arith.constant 0 : i32
    %c0_i32_0 = arith.constant 0 : i32
    %c0_i32_1 = arith.constant 0 : i32
    return %c0_i32, %c0_i32_0 : i32, i32
  }
  func.func @transform_18(%arg0: i32) -> (i32, i32) {
    %c0_i32 = arith.constant 0 : i32
    %c0_i32_0 = arith.constant 0 : i32
    %c0_i32_1 = arith.constant 0 : i32
    return %c0_i32, %c0_i32_0 : i32, i32
  }
  func.func @transform_19(%arg0: i32) -> (i32, i32) {
    %c0_i32 = arith.constant 0 : i32
    %c0_i32_0 = arith.constant 0 : i32
    %c0_i32_1 = arith.constant 0 : i32
    return %c0_i32, %c0_i32_0 : i32, i32
  }
  func.func @transform_20(%arg0: i32) -> (i32, i32) {
    %c0_i32 = arith.constant 0 : i32
    %c0_i32_0 = arith.constant 0 : i32
    %c0_i32_1 = arith.constant 0 : i32
    return %c0_i32, %c0_i32_0 : i32, i32
  }
  func.func @transform_21(%arg0: i32) -> (i32, i32) {
    %c0_i32 = arith.constant 0 : i32
    %c0_i32_0 = arith.constant 0 : i32
    %c0_i32_1 = arith.constant 0 : i32
    return %c0_i32, %c0_i32_0 : i32, i32
  }
  func.func @transform_22(%arg0: i32) -> (i32, i32) {
    %c0_i32 = arith.constant 0 : i32
    %c0_i32_0 = arith.constant 0 : i32
    %c0_i32_1 = arith.constant 0 : i32
    return %c0_i32, %c0_i32_0 : i32, i32
  }
  func.func @transform_23(%arg0: i32) -> (i32, i32) {
    %c0_i32 = arith.constant 0 : i32
    %c0_i32_0 = arith.constant 0 : i32
    %c0_i32_1 = arith.constant 0 : i32
    return %c0_i32, %c0_i32_0 : i32, i32
  }
  func.func @transform_24(%arg0: i32) -> (i32, i32) {
    %c0_i32 = arith.constant 0 : i32
    %c0_i32_0 = arith.constant 0 : i32
    %c0_i32_1 = arith.constant 0 : i32
    return %c0_i32, %c0_i32_0 : i32, i32
  }
  func.func @transform_25(%arg0: i32) -> (i32, i32) {
    %c0_i32 = arith.constant 0 : i32
    %c0_i32_0 = arith.constant 0 : i32
    return %arg0, %c0_i32 : i32, i32
  }
}

</mosaic_0001>

<llo_original>
// kernel: tpu_custom_call.1
$region0: #{tpu_custom_call.1}
  #allocation0 [shape = 'u32[]', space=smem, size = 0x4, offset = 0x4, fixed_abs, tag = 'smem constant byte address 0x4 - core index']
  #allocation1 [shape = 'u32[144,128]{1,0:T(1,128)}', space=vmem, size = 0x12000, scoped, tag = 'internal scratch']
  %s0 = inlined_call_operand.hbm [shape: f32[8,128], index: 0, kind: input, shape index: {}]
  %s1 = inlined_call_operand.hbm [shape: f32[128,128], index: 1, kind: input, shape index: {}]
  %s2 = inlined_call_operand.vmem [shape: f32[1,128], index: 2, kind: input, shape index: {}]
  %s3 = inlined_call_operand.hbm [shape: f32[128,128], index: 3, kind: input, shape index: {}]
  %s4 = inlined_call_operand.vmem [shape: f32[1,128], index: 4, kind: input, shape index: {}]
  %s5 = inlined_call_operand.hbm [shape: f32[128,128], index: 5, kind: input, shape index: {}]
  %s6 = inlined_call_operand.vmem [shape: f32[1,128], index: 6, kind: input, shape index: {}]
  %s7 = inlined_call_operand.hbm [shape: f32[128,128], index: 7, kind: input, shape index: {}]
  %s8 = inlined_call_operand.vmem [shape: f32[1,128], index: 8, kind: input, shape index: {}]
  %s9 = inlined_call_operand.hbm [shape: f32[128,128], index: 9, kind: input, shape index: {}]
  %s10 = inlined_call_operand.vmem [shape: f32[1,128], index: 10, kind: input, shape index: {}]
  %s11 = inlined_call_operand.hbm [shape: f32[128,128], index: 11, kind: input, shape index: {}]
  %s12 = inlined_call_operand.vmem [shape: f32[1,128], index: 12, kind: input, shape index: {}]
  %s13 = inlined_call_operand.hbm [shape: f32[128,128], index: 13, kind: input, shape index: {}]
  %s14 = inlined_call_operand.vmem [shape: f32[1,128], index: 14, kind: input, shape index: {}]
  %s15 = inlined_call_operand.hbm [shape: f32[128,128], index: 15, kind: input, shape index: {}]
  %s16 = inlined_call_operand.vmem [shape: f32[1,128], index: 16, kind: input, shape index: {}]
  %s17 = inlined_call_operand.hbm [shape: f32[128,128], index: 17, kind: input, shape index: {}]
  %s18 = inlined_call_operand.vmem [shape: f32[1,128], index: 18, kind: input, shape index: {}]
  %s19 = inlined_call_operand.hbm [shape: f32[128,128], index: 19, kind: input, shape index: {}]
  %s20 = inlined_call_operand.vmem [shape: f32[1,128], index: 20, kind: input, shape index: {}]
  %s21 = inlined_call_operand.hbm [shape: f32[128,128], index: 21, kind: input, shape index: {}]
  %s22 = inlined_call_operand.vmem [shape: f32[1,128], index: 22, kind: input, shape index: {}]
  %s23 = inlined_call_operand.hbm [shape: f32[128,128], index: 23, kind: input, shape index: {}]
  %s24 = inlined_call_operand.vmem [shape: f32[1,128], index: 24, kind: input, shape index: {}]
  %s25 = inlined_call_operand.hbm [shape: f32[8,128], index: 25, kind: output, shape index: {}]
  %s26 = sld [smem:[#allocation0]]
  $region162: #{tpu_custom_call.1} parent=0
    _
  %s28 = ssub.s32 1, %s26
  %s29 = scalar_select 0, %s28, %s26
  $region1: #{tpu_custom_call.1} parent=0
    #allocation2 [shape = 'u8[4096]{0}', space=vmem, size = 0x1000, scoped, tag = 'input window, operand 0, single buffered']
    #allocation3 [shape = 's32[1]{0}', space=sflag, size = 0x4, scoped, tag = 'scoped memory for tpu_custom_call.1']
    #allocation4 [shape = 's32[1]{0}', space=sflag, size = 0x4, scoped, tag = 'scoped memory for tpu_custom_call.1']
    #allocation5 [shape = 'u8[65536]{0}', space=vmem, size = 0x10000, scoped, tag = 'input window, operand 1, single buffered']
    #allocation6 [shape = 's32[1]{0}', space=sflag, size = 0x4, scoped, tag = 'scoped memory for tpu_custom_call.1']
    #allocation7 [shape = 'u8[65536]{0}', space=vmem, size = 0x10000, scoped, tag = 'input window, operand 3, single buffered']
    #allocation8 [shape = 'u8[65536]{0}', space=vmem, size = 0x10000, scoped, tag = 'input window, operand 5, single buffered']
    #allocation9 [shape = 's32[1]{0}', space=sflag, size = 0x4, scoped, tag = 'scoped memory for tpu_custom_call.1']
    #allocation10 [shape = 'u8[65536]{0}', space=vmem, size = 0x10000, scoped, tag = 'input window, operand 7, single buffered']
    #allocation11 [shape = 'u8[65536]{0}', space=vmem, size = 0x10000, scoped, tag = 'input window, operand 9, single buffered']
    #allocation12 [shape = 's32[1]{0}', space=sflag, size = 0x4, scoped, tag = 'scoped memory for tpu_custom_call.1']
    #allocation13 [shape = 'u8[65536]{0}', space=vmem, size = 0x10000, scoped, tag = 'input window, operand 11, single buffered']
    #allocation14 [shape = 'u8[65536]{0}', space=vmem, size = 0x10000, scoped, tag = 'input window, operand 13, single buffered']
    #allocation15 [shape = 's32[1]{0}', space=sflag, size = 0x4, scoped, tag = 'scoped memory for tpu_custom_call.1']
    #allocation16 [shape = 'u8[65536]{0}', space=vmem, size = 0x10000, scoped, tag = 'input window, operand 15, single buffered']
    #allocation17 [shape = 'u8[65536]{0}', space=vmem, size = 0x10000, scoped, tag = 'input window, operand 17, single buffered']
    #allocation18 [shape = 's32[1]{0}', space=sflag, size = 0x4, scoped, tag = 'scoped memory for tpu_custom_call.1']
    #allocation19 [shape = 'u8[65536]{0}', space=vmem, size = 0x10000, scoped, tag = 'input window, operand 19, single buffered']
    #allocation20 [shape = 'u8[65536]{0}', space=vmem, size = 0x10000, scoped, tag = 'input window, operand 21, single buffered']
    #allocation21 [shape = 's32[1]{0}', space=sflag, size = 0x4, scoped, tag = 'scoped memory for tpu_custom_call.1']
    #allocation22 [shape = 'u8[65536]{0}', space=vmem, size = 0x10000, scoped, tag = 'input window, operand 23, single buffered']
    #allocation23 [shape = 'u8[4096]{0}', space=vmem, size = 0x1000, scoped, tag = 'output window, operand 0, single buffered']
    %30 = vsyncpa [#allocation3], 0
    %31 = vsyncpa [#allocation6], 0
    %32 = vsyncpa [#allocation9], 0
    %33 = vsyncpa [#allocation12], 0
    %34 = vsyncpa [#allocation15], 0
    %35 = vsyncpa [#allocation18], 0
    %36 = vsyncpa [#allocation21], 0
    %37 = vsyncpa [#allocation4], 0
    // Predicated region
    $region2: #{tpu_custom_call.1} parent=1 // pred_check
      _
    $region3: #{tpu_custom_call.1} parent=1 // pred_check_branch
      %39 = sbr.rel (0) target = $region5
    $region4: #{tpu_custom_call.1} parent=1 // pred_region
      %s41 = ssub.s32 128, 128
      %42 = vsyncadd [#allocation3], %s41
      %s44 = sshll.u32 [#allocation2], 4
      %s45 = int_to_ptr.vmem [resolvable:$true] %s44
      %47 = dma.hbm_to_vmem [thread:$0]  %s0, 128, %s45, [#allocation3]
    $region5: #{tpu_custom_call.1} parent=1 // pred_fallthru
      _
    // Predicated region
    $region6: #{tpu_custom_call.1} parent=1 // pred_check
      _
    $region7: #{tpu_custom_call.1} parent=1 // pred_check_branch
      %49 = sbr.rel (0) target = $region9
    $region8: #{tpu_custom_call.1} parent=1 // pred_region
      %s51 = ssub.s32 2048, 2048
      %52 = vsyncadd [#allocation6], %s51
      %s53 = sshll.u32 [#allocation5], 4
      %s54 = int_to_ptr.vmem [resolvable:$true] %s53
      %59 = dma.hbm_to_vmem [thread:$0]  %s1, 2048, %s54, [#allocation6], 128, 128, 8
    $region9: #{tpu_custom_call.1} parent=1 // pred_fallthru
      _
    // Predicated region
    $region10: #{tpu_custom_call.1} parent=1 // pred_check
      _
    $region11: #{tpu_custom_call.1} parent=1 // pred_check_branch
      %61 = sbr.rel (0) target = $region13
    $region12: #{tpu_custom_call.1} parent=1 // pred_region
      _
    $region13: #{tpu_custom_call.1} parent=1 // pred_fallthru
      _
    // Predicated region
    $region14: #{tpu_custom_call.1} parent=1 // pred_check
      _
    $region15: #{tpu_custom_call.1} parent=1 // pred_check_branch
      %63 = sbr.rel (0) target = $region17
    $region16: #{tpu_custom_call.1} parent=1 // pred_region
      %s65 = ssub.s32 2048, 2048
      %66 = vsyncadd [#allocation6], %s65
      %s67 = sshll.u32 [#allocation7], 4
      %s68 = int_to_ptr.vmem [resolvable:$true] %s67
      %73 = dma.hbm_to_vmem [thread:$0]  %s3, 2048, %s68, [#allocation6], 128, 128, 8
    $region17: #{tpu_custom_call.1} parent=1 // pred_fallthru
      _
    // Predicated region
    $region18: #{tpu_custom_call.1} parent=1 // pred_check
      _
    $region19: #{tpu_custom_call.1} parent=1 // pred_check_branch
      %75 = sbr.rel (0) target = $region21
    $region20: #{tpu_custom_call.1} parent=1 // pred_region
      _
    $region21: #{tpu_custom_call.1} parent=1 // pred_fallthru
      _
    // Predicated region
    $region22: #{tpu_custom_call.1} parent=1 // pred_check
      _
    $region23: #{tpu_custom_call.1} parent=1 // pred_check_branch
      %77 = sbr.rel (0) target = $region25
    $region24: #{tpu_custom_call.1} parent=1 // pred_region
      %s79 = ssub.s32 2048, 2048
      %80 = vsyncadd [#allocation9], %s79
      %s81 = sshll.u32 [#allocation8], 4
      %s82 = int_to_ptr.vmem [resolvable:$true] %s81
      %87 = dma.hbm_to_vmem [thread:$0]  %s5, 2048, %s82, [#allocation9], 128, 128, 8
    $region25: #{tpu_custom_call.1} parent=1 // pred_fallthru
      _
    // Predicated region
    $region26: #{tpu_custom_call.1} parent=1 // pred_check
      _
    $region27: #{tpu_custom_call.1} parent=1 // pred_check_branch
      %89 = sbr.rel (0) target = $region29
    $region28: #{tpu_custom_call.1} parent=1 // pred_region
      _
    $region29: #{tpu_custom_call.1} parent=1 // pred_fallthru
      _
    // Predicated region
    $region30: #{tpu_custom_call.1} parent=1 // pred_check
      _
    $region31: #{tpu_custom_call.1} parent=1 // pred_check_branch
      %91 = sbr.rel (0) target = $region33
    $region32: #{tpu_custom_call.1} parent=1 // pred_region
      %s93 = ssub.s32 2048, 2048
      %94 = vsyncadd [#allocation9], %s93
      %s95 = sshll.u32 [#allocation10], 4
      %s96 = int_to_ptr.vmem [resolvable:$true] %s95
      %101 = dma.hbm_to_vmem [thread:$0]  %s7, 2048, %s96, [#allocation9], 128, 128, 8
    $region33: #{tpu_custom_call.1} parent=1 // pred_fallthru
      _
    // Predicated region
    $region34: #{tpu_custom_call.1} parent=1 // pred_check
      _
    $region35: #{tpu_custom_call.1} parent=1 // pred_check_branch
      %103 = sbr.rel (0) target = $region37
    $region36: #{tpu_custom_call.1} parent=1 // pred_region
      _
    $region37: #{tpu_custom_call.1} parent=1 // pred_fallthru
      _
    // Predicated region
    $region38: #{tpu_custom_call.1} parent=1 // pred_check
      _
    $region39: #{tpu_custom_call.1} parent=1 // pred_check_branch
      %105 = sbr.rel (0) target = $region41
    $region40: #{tpu_custom_call.1} parent=1 // pred_region
      %s107 = ssub.s32 2048, 2048
      %108 = vsyncadd [#allocation12], %s107
      %s109 = sshll.u32 [#allocation11], 4
      %s110 = int_to_ptr.vmem [resolvable:$true] %s109
      %115 = dma.hbm_to_vmem [thread:$0]  %s9, 2048, %s110, [#allocation12], 128, 128, 8
    $region41: #{tpu_custom_call.1} parent=1 // pred_fallthru
      _
    // Predicated region
    $region42: #{tpu_custom_call.1} parent=1 // pred_check
      _
    $region43: #{tpu_custom_call.1} parent=1 // pred_check_branch
      %117 = sbr.rel (0) target = $region45
    $region44: #{tpu_custom_call.1} parent=1 // pred_region
      _
    $region45: #{tpu_custom_call.1} parent=1 // pred_fallthru
      _
    // Predicated region
    $region46: #{tpu_custom_call.1} parent=1 // pred_check
      _
    $region47: #{tpu_custom_call.1} parent=1 // pred_check_branch
      %119 = sbr.rel (0) target = $region49
    $region48: #{tpu_custom_call.1} parent=1 // pred_region
      %s121 = ssub.s32 2048, 2048
      %122 = vsyncadd [#allocation12], %s121
      %s123 = sshll.u32 [#allocation13], 4
      %s124 = int_to_ptr.vmem [resolvable:$true] %s123
      %129 = dma.hbm_to_vmem [thread:$0]  %s11, 2048, %s124, [#allocation12], 128, 128, 8
    $region49: #{tpu_custom_call.1} parent=1 // pred_fallthru
      _
    // Predicated region
    $region50: #{tpu_custom_call.1} parent=1 // pred_check
      _
    $region51: #{tpu_custom_call.1} parent=1 // pred_check_branch
      %131 = sbr.rel (0) target = $region53
    $region52: #{tpu_custom_call.1} parent=1 // pred_region
      _
    $region53: #{tpu_custom_call.1} parent=1 // pred_fallthru
      _
    // Predicated region
    $region54: #{tpu_custom_call.1} parent=1 // pred_check
      _
    $region55: #{tpu_custom_call.1} parent=1 // pred_check_branch
      %133 = sbr.rel (0) target = $region57
    $region56: #{tpu_custom_call.1} parent=1 // pred_region
      %s135 = ssub.s32 2048, 2048
      %136 = vsyncadd [#allocation15], %s135
      %s137 = sshll.u32 [#allocation14], 4
      %s138 = int_to_ptr.vmem [resolvable:$true] %s137
      %143 = dma.hbm_to_vmem [thread:$0]  %s13, 2048, %s138, [#allocation15], 128, 128, 8
    $region57: #{tpu_custom_call.1} parent=1 // pred_fallthru
      _
    // Predicated region
    $region58: #{tpu_custom_call.1} parent=1 // pred_check
      _
    $region59: #{tpu_custom_call.1} parent=1 // pred_check_branch
      %145 = sbr.rel (0) target = $region61
    $region60: #{tpu_custom_call.1} parent=1 // pred_region
      _
    $region61: #{tpu_custom_call.1} parent=1 // pred_fallthru
      _
    // Predicated region
    $region62: #{tpu_custom_call.1} parent=1 // pred_check
      _
    $region63: #{tpu_custom_call.1} parent=1 // pred_check_branch
      %147 = sbr.rel (0) target = $region65
    $region64: #{tpu_custom_call.1} parent=1 // pred_region
      %s149 = ssub.s32 2048, 2048
      %150 = vsyncadd [#allocation15], %s149
      %s151 = sshll.u32 [#allocation16], 4
      %s152 = int_to_ptr.vmem [resolvable:$true] %s151
      %157 = dma.hbm_to_vmem [thread:$0]  %s15, 2048, %s152, [#allocation15], 128, 128, 8
    $region65: #{tpu_custom_call.1} parent=1 // pred_fallthru
      _
    // Predicated region
    $region66: #{tpu_custom_call.1} parent=1 // pred_check
      _
    $region67: #{tpu_custom_call.1} parent=1 // pred_check_branch
      %159 = sbr.rel (0) target = $region69
    $region68: #{tpu_custom_call.1} parent=1 // pred_region
      _
    $region69: #{tpu_custom_call.1} parent=1 // pred_fallthru
      _
    // Predicated region
    $region70: #{tpu_custom_call.1} parent=1 // pred_check
      _
    $region71: #{tpu_custom_call.1} parent=1 // pred_check_branch
      %161 = sbr.rel (0) target = $region73
    $region72: #{tpu_custom_call.1} parent=1 // pred_region
      %s163 = ssub.s32 2048, 2048
      %164 = vsyncadd [#allocation18], %s163
      %s165 = sshll.u32 [#allocation17], 4
      %s166 = int_to_ptr.vmem [resolvable:$true] %s165
      %171 = dma.hbm_to_vmem [thread:$0]  %s17, 2048, %s166, [#allocation18], 128, 128, 8
    $region73: #{tpu_custom_call.1} parent=1 // pred_fallthru
      _
    // Predicated region
    $region74: #{tpu_custom_call.1} parent=1 // pred_check
      _
    $region75: #{tpu_custom_call.1} parent=1 // pred_check_branch
      %173 = sbr.rel (0) target = $region77
    $region76: #{tpu_custom_call.1} parent=1 // pred_region
      _
    $region77: #{tpu_custom_call.1} parent=1 // pred_fallthru
      _
    // Predicated region
    $region78: #{tpu_custom_call.1} parent=1 // pred_check
      _
    $region79: #{tpu_custom_call.1} parent=1 // pred_check_branch
      %175 = sbr.rel (0) target = $region81
    $region80: #{tpu_custom_call.1} parent=1 // pred_region
      %s177 = ssub.s32 2048, 2048
      %178 = vsyncadd [#allocation18], %s177
      %s179 = sshll.u32 [#allocation19], 4
      %s180 = int_to_ptr.vmem [resolvable:$true] %s179
      %185 = dma.hbm_to_vmem [thread:$0]  %s19, 2048, %s180, [#allocation18], 128, 128, 8
    $region81: #{tpu_custom_call.1} parent=1 // pred_fallthru
      _
    // Predicated region
    $region82: #{tpu_custom_call.1} parent=1 // pred_check
      _
    $region83: #{tpu_custom_call.1} parent=1 // pred_check_branch
      %187 = sbr.rel (0) target = $region85
    $region84: #{tpu_custom_call.1} parent=1 // pred_region
      _
    $region85: #{tpu_custom_call.1} parent=1 // pred_fallthru
      _
    // Predicated region
    $region86: #{tpu_custom_call.1} parent=1 // pred_check
      _
    $region87: #{tpu_custom_call.1} parent=1 // pred_check_branch
      %189 = sbr.rel (0) target = $region89
    $region88: #{tpu_custom_call.1} parent=1 // pred_region
      %s191 = ssub.s32 2048, 2048
      %192 = vsyncadd [#allocation21], %s191
      %s193 = sshll.u32 [#allocation20], 4
      %s194 = int_to_ptr.vmem [resolvable:$true] %s193
      %199 = dma.hbm_to_vmem [thread:$0]  %s21, 2048, %s194, [#allocation21], 128, 128, 8
    $region89: #{tpu_custom_call.1} parent=1 // pred_fallthru
      _
    // Predicated region
    $region90: #{tpu_custom_call.1} parent=1 // pred_check
      _
    $region91: #{tpu_custom_call.1} parent=1 // pred_check_branch
      %201 = sbr.rel (0) target = $region93
    $region92: #{tpu_custom_call.1} parent=1 // pred_region
      _
    $region93: #{tpu_custom_call.1} parent=1 // pred_fallthru
      _
    // Predicated region
    $region94: #{tpu_custom_call.1} parent=1 // pred_check
      _
    $region95: #{tpu_custom_call.1} parent=1 // pred_check_branch
      %203 = sbr.rel (0) target = $region97
    $region96: #{tpu_custom_call.1} parent=1 // pred_region
      %s205 = ssub.s32 2048, 2048
      %206 = vsyncadd [#allocation21], %s205
      %s207 = sshll.u32 [#allocation22], 4
      %s208 = int_to_ptr.vmem [resolvable:$true] %s207
      %213 = dma.hbm_to_vmem [thread:$0]  %s23, 2048, %s208, [#allocation21], 128, 128, 8
    $region97: #{tpu_custom_call.1} parent=1 // pred_fallthru
      _
    // Predicated region
    $region98: #{tpu_custom_call.1} parent=1 // pred_check
      _
    $region99: #{tpu_custom_call.1} parent=1 // pred_check_branch
      %215 = sbr.rel (0) target = $region101
    $region100: #{tpu_custom_call.1} parent=1 // pred_region
      _
    $region101: #{tpu_custom_call.1} parent=1 // pred_fallthru
      _
    // Predicated region
    $region102: #{tpu_custom_call.1} parent=1 // pred_check
      _
    $region103: #{tpu_custom_call.1} parent=1 // pred_check_branch
      %217 = sbr.rel (0) target = $region105
    $region104: #{tpu_custom_call.1} parent=1 // pred_region
      %218 = dma.done [#allocation3], 128
    $region105: #{tpu_custom_call.1} parent=1 // pred_fallthru
      _
    // Predicated region
    $region106: #{tpu_custom_call.1} parent=1 // pred_check
      _
    $region107: #{tpu_custom_call.1} parent=1 // pred_check_branch
      %220 = sbr.rel (0) target = $region109
    $region108: #{tpu_custom_call.1} parent=1 // pred_region
      %221 = dma.done [#allocation6], 2048
    $region109: #{tpu_custom_call.1} parent=1 // pred_fallthru
      _
    // Predicated region
    $region110: #{tpu_custom_call.1} parent=1 // pred_check
      _
    $region111: #{tpu_custom_call.1} parent=1 // pred_check_branch
      %223 = sbr.rel (0) target = $region113
    $region112: #{tpu_custom_call.1} parent=1 // pred_region
      %224 = dma.done [#allocation6], 2048
    $region113: #{tpu_custom_call.1} parent=1 // pred_fallthru
      _
    // Predicated region
    $region114: #{tpu_custom_call.1} parent=1 // pred_check
      _
    $region115: #{tpu_custom_call.1} parent=1 // pred_check_branch
      %226 = sbr.rel (0) target = $region117
    $region116: #{tpu_custom_call.1} parent=1 // pred_region
      %227 = dma.done [#allocation9], 2048
    $region117: #{tpu_custom_call.1} parent=1 // pred_fallthru
      _
    // Predicated region
    $region118: #{tpu_custom_call.1} parent=1 // pred_check
      _
    $region119: #{tpu_custom_call.1} parent=1 // pred_check_branch
      %229 = sbr.rel (0) target = $region121
    $region120: #{tpu_custom_call.1} parent=1 // pred_region
      %230 = dma.done [#allocation9], 2048
    $region121: #{tpu_custom_call.1} parent=1 // pred_fallthru
      _
    // Predicated region
    $region122: #{tpu_custom_call.1} parent=1 // pred_check
      _
    $region123: #{tpu_custom_call.1} parent=1 // pred_check_branch
      %232 = sbr.rel (0) target = $region125
    $region124: #{tpu_custom_call.1} parent=1 // pred_region
      %233 = dma.done [#allocation12], 2048
    $region125: #{tpu_custom_call.1} parent=1 // pred_fallthru
      _
    // Predicated region
    $region126: #{tpu_custom_call.1} parent=1 // pred_check
      _
    $region127: #{tpu_custom_call.1} parent=1 // pred_check_branch
      %235 = sbr.rel (0) target = $region129
    $region128: #{tpu_custom_call.1} parent=1 // pred_region
      %236 = dma.done [#allocation12], 2048
    $region129: #{tpu_custom_call.1} parent=1 // pred_fallthru
      _
    // Predicated region
    $region130: #{tpu_custom_call.1} parent=1 // pred_check
      _
    $region131: #{tpu_custom_call.1} parent=1 // pred_check_branch
      %238 = sbr.rel (0) target = $region133
    $region132: #{tpu_custom_call.1} parent=1 // pred_region
      %239 = dma.done [#allocation15], 2048
    $region133: #{tpu_custom_call.1} parent=1 // pred_fallthru
      _
    // Predicated region
    $region134: #{tpu_custom_call.1} parent=1 // pred_check
      _
    $region135: #{tpu_custom_call.1} parent=1 // pred_check_branch
      %241 = sbr.rel (0) target = $region137
    $region136: #{tpu_custom_call.1} parent=1 // pred_region
      %242 = dma.done [#allocation15], 2048
    $region137: #{tpu_custom_call.1} parent=1 // pred_fallthru
      _
    // Predicated region
    $region138: #{tpu_custom_call.1} parent=1 // pred_check
      _
    $region139: #{tpu_custom_call.1} parent=1 // pred_check_branch
      %244 = sbr.rel (0) target = $region141
    $region140: #{tpu_custom_call.1} parent=1 // pred_region
      %245 = dma.done [#allocation18], 2048
    $region141: #{tpu_custom_call.1} parent=1 // pred_fallthru
      _
    // Predicated region
    $region142: #{tpu_custom_call.1} parent=1 // pred_check
      _
    $region143: #{tpu_custom_call.1} parent=1 // pred_check_branch
      %247 = sbr.rel (0) target = $region145
    $region144: #{tpu_custom_call.1} parent=1 // pred_region
      %248 = dma.done [#allocation18], 2048
    $region145: #{tpu_custom_call.1} parent=1 // pred_fallthru
      _
    // Predicated region
    $region146: #{tpu_custom_call.1} parent=1 // pred_check
      _
    $region147: #{tpu_custom_call.1} parent=1 // pred_check_branch
      %250 = sbr.rel (0) target = $region149
    $region148: #{tpu_custom_call.1} parent=1 // pred_region
      %251 = dma.done [#allocation21], 2048
    $region149: #{tpu_custom_call.1} parent=1 // pred_fallthru
      _
    // Predicated region
    $region150: #{tpu_custom_call.1} parent=1 // pred_check
      _
    $region151: #{tpu_custom_call.1} parent=1 // pred_check_branch
      %253 = sbr.rel (0) target = $region153
    $region152: #{tpu_custom_call.1} parent=1 // pred_region
      %254 = dma.done [#allocation21], 2048
    $region153: #{tpu_custom_call.1} parent=1 // pred_fallthru
      _
    %v255 = vld [vmem:[#allocation2] sm:$0xff]
    %v256 = vld [vmem:[#allocation5] sm:$0xff]
    %v257 = vld [vmem:[#allocation5 + $0x8] sm:$0xff]
    %v258 = vld [vmem:[#allocation5 + $0x10] sm:$0xff]
    %v259 = vld [vmem:[#allocation5 + $0x18] sm:$0xff]
    %v260 = vld [vmem:[#allocation5 + $0x20] sm:$0xff]
    %v261 = vld [vmem:[#allocation5 + $0x28] sm:$0xff]
    %v262 = vld [vmem:[#allocation5 + $0x30] sm:$0xff]
    %v263 = vld [vmem:[#allocation5 + $0x38] sm:$0xff]
    %v264 = vld [vmem:[#allocation5 + $0x40] sm:$0xff]
    %v265 = vld [vmem:[#allocation5 + $0x48] sm:$0xff]
    %v266 = vld [vmem:[#allocation5 + $0x50] sm:$0xff]
    %v267 = vld [vmem:[#allocation5 + $0x58] sm:$0xff]
    %v268 = vld [vmem:[#allocation5 + $0x60] sm:$0xff]
    %v269 = vld [vmem:[#allocation5 + $0x68] sm:$0xff]
    %v270 = vld [vmem:[#allocation5 + $0x70] sm:$0xff]
    %v271 = vld [vmem:[#allocation5 + $0x78] sm:$0xff]
    %v272 = vld [vmem:[%s2] sm:$0x1]
    %v274 = vlaneseq
    %v275 = vshrl.u32 %v274, 7
    %v276 = vsub.s32 0, %v275
    %v277 = vrot.slane %v272, %v276
    %279 = vmatprep.subr.mxu0 0.0
    %280 = vmatpush1.msra.mxu0 %v256
    %281 = vmatprep.subr.mxu0 0.0
    %282 = vmatpush1.msra.mxu0 %v257
    %283 = vmatprep.subr.mxu0 0.0
    %284 = vmatpush1.msra.mxu0 %v258
    %285 = vmatprep.subr.mxu0 0.0
    %286 = vmatpush1.msra.mxu0 %v259
    %287 = vmatprep.subr.mxu0 0.0
    %288 = vmatpush1.msra.mxu0 %v260
    %289 = vmatprep.subr.mxu0 0.0
    %290 = vmatpush1.msra.mxu0 %v261
    %291 = vmatprep.subr.mxu0 0.0
    %292 = vmatpush1.msra.mxu0 %v262
    %293 = vmatprep.subr.mxu0 0.0
    %294 = vmatpush1.msra.mxu0 %v263
    %295 = vmatprep.subr.mxu0 0.0
    %296 = vmatpush1.msra.mxu0 %v264
    %297 = vmatprep.subr.mxu0 0.0
    %298 = vmatpush1.msra.mxu0 %v265
    %299 = vmatprep.subr.mxu0 0.0
    %300 = vmatpush1.msra.mxu0 %v266
    %301 = vmatprep.subr.mxu0 0.0
    %302 = vmatpush1.msra.mxu0 %v267
    %303 = vmatprep.subr.mxu0 0.0
    %304 = vmatpush1.msra.mxu0 %v268
    %305 = vmatprep.subr.mxu0 0.0
    %306 = vmatpush1.msra.mxu0 %v269
    %307 = vmatprep.subr.mxu0 0.0
    %308 = vmatpush1.msra.mxu0 %v270
    %309 = vmatprep.subr.mxu0 0.0
    %310 = vmatpush1.msra.mxu0 %v271
    %311 = vmatprep.subr.mxu0 0.0
    %312 = vmatpush1.msra.mxu0 0.0
    %313 = vmatprep.subr.mxu0 0.0
    %314 = vmatpush1.msra.mxu0 0.0
    %315 = vmatprep.subr.mxu0 0.0
    %316 = vmatpush1.msra.mxu0 0.0
    %317 = vmatprep.subr.mxu0 0.0
    %318 = vmatpush1.msra.mxu0 0.0
    %319 = vmatprep.subr.mxu0 0.0
    %320 = vmatpush1.msra.mxu0 0.0
    %321 = vmatprep.subr.mxu0 0.0
    %322 = vmatpush1.msra.mxu0 0.0
    %323 = vmatprep.subr.mxu0 0.0
    %324 = vmatpush1.msra.mxu0 0.0
    %325 = vmatprep.subr.mxu0 0.0
    %326 = vmatpush1.msra.mxu0 0.0
    %327 = vmatprep.subr.mxu0 0.0
    %328 = vmatpush1.msra.mxu0 0.0
    %329 = vmatprep.subr.mxu0 0.0
    %330 = vmatpush1.msra.mxu0 0.0
    %331 = vmatprep.subr.mxu0 0.0
    %332 = vmatpush1.msra.mxu0 0.0
    %333 = vmatprep.subr.mxu0 0.0
    %334 = vmatpush1.msra.mxu0 0.0
    %335 = vmatprep.subr.mxu0 0.0
    %336 = vmatpush1.msra.mxu0 0.0
    %337 = vmatprep.subr.mxu0 0.0
    %338 = vmatpush1.msra.mxu0 0.0
    %339 = vmatprep.subr.mxu0 0.0
    %340 = vmatpush1.msra.mxu0 0.0
    %341 = vmatprep.subr.mxu0 0.0
    %342 = vmatpush1.msra.mxu0 0.0
    %343 = vmatprep.mubr.f32.mxu0 0.0
    %344 = vmatmul.mubr.f32.gmra.mrb[0].mxu0 %v255
    %v345 = vpop.f32.mrb[0].mxu0
    %v346 = vadd.f32 %v277, %v345
    %v347 = vpop.f32.mrb[0].mxu0
    %348 = vdwg.mxu0
    %v349 = vmax.f32 %v346, 0.0
    %v350 = vld [vmem:[#allocation7] sm:$0xff]
    %v351 = vld [vmem:[#allocation7 + $0x8] sm:$0xff]
    %v352 = vld [vmem:[#allocation7 + $0x10] sm:$0xff]
    %v353 = vld [vmem:[#allocation7 + $0x18] sm:$0xff]
    %v354 = vld [vmem:[#allocation7 + $0x20] sm:$0xff]
    %v355 = vld [vmem:[#allocation7 + $0x28] sm:$0xff]
    %v356 = vld [vmem:[#allocation7 + $0x30] sm:$0xff]
    %v357 = vld [vmem:[#allocation7 + $0x38] sm:$0xff]
    %v358 = vld [vmem:[#allocation7 + $0x40] sm:$0xff]
    %v359 = vld [vmem:[#allocation7 + $0x48] sm:$0xff]
    %v360 = vld [vmem:[#allocation7 + $0x50] sm:$0xff]
    %v361 = vld [vmem:[#allocation7 + $0x58] sm:$0xff]
    %v362 = vld [vmem:[#allocation7 + $0x60] sm:$0xff]
    %v363 = vld [vmem:[#allocation7 + $0x68] sm:$0xff]
    %v364 = vld [vmem:[#allocation7 + $0x70] sm:$0xff]
    %v365 = vld [vmem:[#allocation7 + $0x78] sm:$0xff]
    %v366 = vld [vmem:[%s4] sm:$0x1]
    %v368 = vlaneseq
    %v369 = vshrl.u32 %v368, 7
    %v370 = vsub.s32 0, %v369
    %v371 = vrot.slane %v366, %v370
    %373 = vmatprep.subr.mxu0 0.0
    %374 = vmatpush1.msra.mxu0 %v350
    %375 = vmatprep.subr.mxu0 0.0
    %376 = vmatpush1.msra.mxu0 %v351
    %377 = vmatprep.subr.mxu0 0.0
    %378 = vmatpush1.msra.mxu0 %v352
    %379 = vmatprep.subr.mxu0 0.0
    %380 = vmatpush1.msra.mxu0 %v353
    %381 = vmatprep.subr.mxu0 0.0
    %382 = vmatpush1.msra.mxu0 %v354
    %383 = vmatprep.subr.mxu0 0.0
    %384 = vmatpush1.msra.mxu0 %v355
    %385 = vmatprep.subr.mxu0 0.0
    %386 = vmatpush1.msra.mxu0 %v356
    %387 = vmatprep.subr.mxu0 0.0
    %388 = vmatpush1.msra.mxu0 %v357
    %389 = vmatprep.subr.mxu0 0.0
    %390 = vmatpush1.msra.mxu0 %v358
    %391 = vmatprep.subr.mxu0 0.0
    %392 = vmatpush1.msra.mxu0 %v359
    %393 = vmatprep.subr.mxu0 0.0
    %394 = vmatpush1.msra.mxu0 %v360
    %395 = vmatprep.subr.mxu0 0.0
    %396 = vmatpush1.msra.mxu0 %v361
    %397 = vmatprep.subr.mxu0 0.0
    %398 = vmatpush1.msra.mxu0 %v362
    %399 = vmatprep.subr.mxu0 0.0
    %400 = vmatpush1.msra.mxu0 %v363
    %401 = vmatprep.subr.mxu0 0.0
    %402 = vmatpush1.msra.mxu0 %v364
    %403 = vmatprep.subr.mxu0 0.0
    %404 = vmatpush1.msra.mxu0 %v365
    %405 = vmatprep.subr.mxu0 0.0
    %406 = vmatpush1.msra.mxu0 0.0
    %407 = vmatprep.subr.mxu0 0.0
    %408 = vmatpush1.msra.mxu0 0.0
    %409 = vmatprep.subr.mxu0 0.0
    %410 = vmatpush1.msra.mxu0 0.0
    %411 = vmatprep.subr.mxu0 0.0
    %412 = vmatpush1.msra.mxu0 0.0
    %413 = vmatprep.subr.mxu0 0.0
    %414 = vmatpush1.msra.mxu0 0.0
    %415 = vmatprep.subr.mxu0 0.0
    %416 = vmatpush1.msra.mxu0 0.0
    %417 = vmatprep.subr.mxu0 0.0
    %418 = vmatpush1.msra.mxu0 0.0
    %419 = vmatprep.subr.mxu0 0.0
    %420 = vmatpush1.msra.mxu0 0.0
    %421 = vmatprep.subr.mxu0 0.0
    %422 = vmatpush1.msra.mxu0 0.0
    %423 = vmatprep.subr.mxu0 0.0
    %424 = vmatpush1.msra.mxu0 0.0
    %425 = vmatprep.subr.mxu0 0.0
    %426 = vmatpush1.msra.mxu0 0.0
    %427 = vmatprep.subr.mxu0 0.0
    %428 = vmatpush1.msra.mxu0 0.0
    %429 = vmatprep.subr.mxu0 0.0
    %430 = vmatpush1.msra.mxu0 0.0
    %431 = vmatprep.subr.mxu0 0.0
    %432 = vmatpush1.msra.mxu0 0.0
    %433 = vmatprep.subr.mxu0 0.0
    %434 = vmatpush1.msra.mxu0 0.0
    %435 = vmatprep.subr.mxu0 0.0
    %436 = vmatpush1.msra.mxu0 0.0
    %437 = vmatprep.mubr.f32.mxu0 0.0
    %438 = vmatmul.mubr.f32.gmra.mrb[0].mxu0 %v349
    %v439 = vpop.f32.mrb[0].mxu0
    %v440 = vadd.f32 %v371, %v439
    %v441 = vpop.f32.mrb[0].mxu0
    %442 = vdwg.mxu0
    %v443 = vmax.f32 %v440, 0.0
    %v444 = vld [vmem:[#allocation8] sm:$0xff]
    %v445 = vld [vmem:[#allocation8 + $0x8] sm:$0xff]
    %v446 = vld [vmem:[#allocation8 + $0x10] sm:$0xff]
    %v447 = vld [vmem:[#allocation8 + $0x18] sm:$0xff]
    %v448 = vld [vmem:[#allocation8 + $0x20] sm:$0xff]
    %v449 = vld [vmem:[#allocation8 + $0x28] sm:$0xff]
    %v450 = vld [vmem:[#allocation8 + $0x30] sm:$0xff]
    %v451 = vld [vmem:[#allocation8 + $0x38] sm:$0xff]
    %v452 = vld [vmem:[#allocation8 + $0x40] sm:$0xff]
    %v453 = vld [vmem:[#allocation8 + $0x48] sm:$0xff]
    %v454 = vld [vmem:[#allocation8 + $0x50] sm:$0xff]
    %v455 = vld [vmem:[#allocation8 + $0x58] sm:$0xff]
    %v456 = vld [vmem:[#allocation8 + $0x60] sm:$0xff]
    %v457 = vld [vmem:[#allocation8 + $0x68] sm:$0xff]
    %v458 = vld [vmem:[#allocation8 + $0x70] sm:$0xff]
    %v459 = vld [vmem:[#allocation8 + $0x78] sm:$0xff]
    %v460 = vld [vmem:[%s6] sm:$0x1]
    %v462 = vlaneseq
    %v463 = vshrl.u32 %v462, 7
    %v464 = vsub.s32 0, %v463
    %v465 = vrot.slane %v460, %v464
    %467 = vmatprep.subr.mxu0 0.0
    %468 = vmatpush1.msra.mxu0 %v444
    %469 = vmatprep.subr.mxu0 0.0
    %470 = vmatpush1.msra.mxu0 %v445
    %471 = vmatprep.subr.mxu0 0.0
    %472 = vmatpush1.msra.mxu0 %v446
    %473 = vmatprep.subr.mxu0 0.0
    %474 = vmatpush1.msra.mxu0 %v447
    %475 = vmatprep.subr.mxu0 0.0
    %476 = vmatpush1.msra.mxu0 %v448
    %477 = vmatprep.subr.mxu0 0.0
    %478 = vmatpush1.msra.mxu0 %v449
    %479 = vmatprep.subr.mxu0 0.0
    %480 = vmatpush1.msra.mxu0 %v450
    %481 = vmatprep.subr.mxu0 0.0
    %482 = vmatpush1.msra.mxu0 %v451
    %483 = vmatprep.subr.mxu0 0.0
    %484 = vmatpush1.msra.mxu0 %v452
    %485 = vmatprep.subr.mxu0 0.0
    %486 = vmatpush1.msra.mxu0 %v453
    %487 = vmatprep.subr.mxu0 0.0
    %488 = vmatpush1.msra.mxu0 %v454
    %489 = vmatprep.subr.mxu0 0.0
    %490 = vmatpush1.msra.mxu0 %v455
    %491 = vmatprep.subr.mxu0 0.0
    %492 = vmatpush1.msra.mxu0 %v456
    %493 = vmatprep.subr.mxu0 0.0
    %494 = vmatpush1.msra.mxu0 %v457
    %495 = vmatprep.subr.mxu0 0.0
    %496 = vmatpush1.msra.mxu0 %v458
    %497 = vmatprep.subr.mxu0 0.0
    %498 = vmatpush1.msra.mxu0 %v459
    %499 = vmatprep.subr.mxu0 0.0
    %500 = vmatpush1.msra.mxu0 0.0
    %501 = vmatprep.subr.mxu0 0.0
    %502 = vmatpush1.msra.mxu0 0.0
    %503 = vmatprep.subr.mxu0 0.0
    %504 = vmatpush1.msra.mxu0 0.0
    %505 = vmatprep.subr.mxu0 0.0
    %506 = vmatpush1.msra.mxu0 0.0
    %507 = vmatprep.subr.mxu0 0.0
    %508 = vmatpush1.msra.mxu0 0.0
    %509 = vmatprep.subr.mxu0 0.0
    %510 = vmatpush1.msra.mxu0 0.0
    %511 = vmatprep.subr.mxu0 0.0
    %512 = vmatpush1.msra.mxu0 0.0
    %513 = vmatprep.subr.mxu0 0.0
    %514 = vmatpush1.msra.mxu0 0.0
    %515 = vmatprep.subr.mxu0 0.0
    %516 = vmatpush1.msra.mxu0 0.0
    %517 = vmatprep.subr.mxu0 0.0
    %518 = vmatpush1.msra.mxu0 0.0
    %519 = vmatprep.subr.mxu0 0.0
    %520 = vmatpush1.msra.mxu0 0.0
    %521 = vmatprep.subr.mxu0 0.0
    %522 = vmatpush1.msra.mxu0 0.0
    %523 = vmatprep.subr.mxu0 0.0
    %524 = vmatpush1.msra.mxu0 0.0
    %525 = vmatprep.subr.mxu0 0.0
    %526 = vmatpush1.msra.mxu0 0.0
    %527 = vmatprep.subr.mxu0 0.0
    %528 = vmatpush1.msra.mxu0 0.0
    %529 = vmatprep.subr.mxu0 0.0
    %530 = vmatpush1.msra.mxu0 0.0
    %531 = vmatprep.mubr.f32.mxu0 0.0
    %532 = vmatmul.mubr.f32.gmra.mrb[0].mxu0 %v443
    %v533 = vpop.f32.mrb[0].mxu0
    %v534 = vadd.f32 %v465, %v533
    %v535 = vpop.f32.mrb[0].mxu0
    %536 = vdwg.mxu0
    %v537 = vmax.f32 %v534, 0.0
    %v538 = vld [vmem:[#allocation10] sm:$0xff]
    %v539 = vld [vmem:[#allocation10 + $0x8] sm:$0xff]
    %v540 = vld [vmem:[#allocation10 + $0x10] sm:$0xff]
    %v541 = vld [vmem:[#allocation10 + $0x18] sm:$0xff]
    %v542 = vld [vmem:[#allocation10 + $0x20] sm:$0xff]
    %v543 = vld [vmem:[#allocation10 + $0x28] sm:$0xff]
    %v544 = vld [vmem:[#allocation10 + $0x30] sm:$0xff]
    %v545 = vld [vmem:[#allocation10 + $0x38] sm:$0xff]
    %v546 = vld [vmem:[#allocation10 + $0x40] sm:$0xff]
    %v547 = vld [vmem:[#allocation10 + $0x48] sm:$0xff]
    %v548 = vld [vmem:[#allocation10 + $0x50] sm:$0xff]
    %v549 = vld [vmem:[#allocation10 + $0x58] sm:$0xff]
    %v550 = vld [vmem:[#allocation10 + $0x60] sm:$0xff]
    %v551 = vld [vmem:[#allocation10 + $0x68] sm:$0xff]
    %v552 = vld [vmem:[#allocation10 + $0x70] sm:$0xff]
    %v553 = vld [vmem:[#allocation10 + $0x78] sm:$0xff]
    %v554 = vld [vmem:[%s8] sm:$0x1]
    %v556 = vlaneseq
    %v557 = vshrl.u32 %v556, 7
    %v558 = vsub.s32 0, %v557
    %v559 = vrot.slane %v554, %v558
    %561 = vmatprep.subr.mxu0 0.0
    %562 = vmatpush1.msra.mxu0 %v538
    %563 = vmatprep.subr.mxu0 0.0
    %564 = vmatpush1.msra.mxu0 %v539
    %565 = vmatprep.subr.mxu0 0.0
    %566 = vmatpush1.msra.mxu0 %v540
    %567 = vmatprep.subr.mxu0 0.0
    %568 = vmatpush1.msra.mxu0 %v541
    %569 = vmatprep.subr.mxu0 0.0
    %570 = vmatpush1.msra.mxu0 %v542
    %571 = vmatprep.subr.mxu0 0.0
    %572 = vmatpush1.msra.mxu0 %v543
    %573 = vmatprep.subr.mxu0 0.0
    %574 = vmatpush1.msra.mxu0 %v544
    %575 = vmatprep.subr.mxu0 0.0
    %576 = vmatpush1.msra.mxu0 %v545
    %577 = vmatprep.subr.mxu0 0.0
    %578 = vmatpush1.msra.mxu0 %v546
    %579 = vmatprep.subr.mxu0 0.0
    %580 = vmatpush1.msra.mxu0 %v547
    %581 = vmatprep.subr.mxu0 0.0
    %582 = vmatpush1.msra.mxu0 %v548
    %583 = vmatprep.subr.mxu0 0.0
    %584 = vmatpush1.msra.mxu0 %v549
    %585 = vmatprep.subr.mxu0 0.0
    %586 = vmatpush1.msra.mxu0 %v550
    %587 = vmatprep.subr.mxu0 0.0
    %588 = vmatpush1.msra.mxu0 %v551
    %589 = vmatprep.subr.mxu0 0.0
    %590 = vmatpush1.msra.mxu0 %v552
    %591 = vmatprep.subr.mxu0 0.0
    %592 = vmatpush1.msra.mxu0 %v553
    %593 = vmatprep.subr.mxu0 0.0
    %594 = vmatpush1.msra.mxu0 0.0
    %595 = vmatprep.subr.mxu0 0.0
    %596 = vmatpush1.msra.mxu0 0.0
    %597 = vmatprep.subr.mxu0 0.0
    %598 = vmatpush1.msra.mxu0 0.0
    %599 = vmatprep.subr.mxu0 0.0
    %600 = vmatpush1.msra.mxu0 0.0
    %601 = vmatprep.subr.mxu0 0.0
    %602 = vmatpush1.msra.mxu0 0.0
    %603 = vmatprep.subr.mxu0 0.0
    %604 = vmatpush1.msra.mxu0 0.0
    %605 = vmatprep.subr.mxu0 0.0
    %606 = vmatpush1.msra.mxu0 0.0
    %607 = vmatprep.subr.mxu0 0.0
    %608 = vmatpush1.msra.mxu0 0.0
    %609 = vmatprep.subr.mxu0 0.0
    %610 = vmatpush1.msra.mxu0 0.0
    %611 = vmatprep.subr.mxu0 0.0
    %612 = vmatpush1.msra.mxu0 0.0
    %613 = vmatprep.subr.mxu0 0.0
    %614 = vmatpush1.msra.mxu0 0.0
    %615 = vmatprep.subr.mxu0 0.0
    %616 = vmatpush1.msra.mxu0 0.0
    %617 = vmatprep.subr.mxu0 0.0
    %618 = vmatpush1.msra.mxu0 0.0
    %619 = vmatprep.subr.mxu0 0.0
    %620 = vmatpush1.msra.mxu0 0.0
    %621 = vmatprep.subr.mxu0 0.0
    %622 = vmatpush1.msra.mxu0 0.0
    %623 = vmatprep.subr.mxu0 0.0
    %624 = vmatpush1.msra.mxu0 0.0
    %625 = vmatprep.mubr.f32.mxu0 0.0
    %626 = vmatmul.mubr.f32.gmra.mrb[0].mxu0 %v537
    %v627 = vpop.f32.mrb[0].mxu0
    %v628 = vadd.f32 %v559, %v627
    %v629 = vpop.f32.mrb[0].mxu0
    %630 = vdwg.mxu0
    %v631 = vmax.f32 %v628, 0.0
    %v632 = vld [vmem:[#allocation11] sm:$0xff]
    %v633 = vld [vmem:[#allocation11 + $0x8] sm:$0xff]
    %v634 = vld [vmem:[#allocation11 + $0x10] sm:$0xff]
    %v635 = vld [vmem:[#allocation11 + $0x18] sm:$0xff]
    %v636 = vld [vmem:[#allocation11 + $0x20] sm:$0xff]
    %v637 = vld [vmem:[#allocation11 + $0x28] sm:$0xff]
    %v638 = vld [vmem:[#allocation11 + $0x30] sm:$0xff]
    %v639 = vld [vmem:[#allocation11 + $0x38] sm:$0xff]
    %v640 = vld [vmem:[#allocation11 + $0x40] sm:$0xff]
    %v641 = vld [vmem:[#allocation11 + $0x48] sm:$0xff]
    %v642 = vld [vmem:[#allocation11 + $0x50] sm:$0xff]
    %v643 = vld [vmem:[#allocation11 + $0x58] sm:$0xff]
    %v644 = vld [vmem:[#allocation11 + $0x60] sm:$0xff]
    %v645 = vld [vmem:[#allocation11 + $0x68] sm:$0xff]
    %v646 = vld [vmem:[#allocation11 + $0x70] sm:$0xff]
    %v647 = vld [vmem:[#allocation11 + $0x78] sm:$0xff]
    %v648 = vld [vmem:[%s10] sm:$0x1]
    %v650 = vlaneseq
    %v651 = vshrl.u32 %v650, 7
    %v652 = vsub.s32 0, %v651
    %v653 = vrot.slane %v648, %v652
    %655 = vmatprep.subr.mxu0 0.0
    %656 = vmatpush1.msra.mxu0 %v632
    %657 = vmatprep.subr.mxu0 0.0
    %658 = vmatpush1.msra.mxu0 %v633
    %659 = vmatprep.subr.mxu0 0.0
    %660 = vmatpush1.msra.mxu0 %v634
    %661 = vmatprep.subr.mxu0 0.0
    %662 = vmatpush1.msra.mxu0 %v635
    %663 = vmatprep.subr.mxu0 0.0
    %664 = vmatpush1.msra.mxu0 %v636
    %665 = vmatprep.subr.mxu0 0.0
    %666 = vmatpush1.msra.mxu0 %v637
    %667 = vmatprep.subr.mxu0 0.0
    %668 = vmatpush1.msra.mxu0 %v638
    %669 = vmatprep.subr.mxu0 0.0
    %670 = vmatpush1.msra.mxu0 %v639
    %671 = vmatprep.subr.mxu0 0.0
    %672 = vmatpush1.msra.mxu0 %v640
    %673 = vmatprep.subr.mxu0 0.0
    %674 = vmatpush1.msra.mxu0 %v641
    %675 = vmatprep.subr.mxu0 0.0
    %676 = vmatpush1.msra.mxu0 %v642
    %677 = vmatprep.subr.mxu0 0.0
    %678 = vmatpush1.msra.mxu0 %v643
    %679 = vmatprep.subr.mxu0 0.0
    %680 = vmatpush1.msra.mxu0 %v644
    %681 = vmatprep.subr.mxu0 0.0
    %682 = vmatpush1.msra.mxu0 %v645
    %683 = vmatprep.subr.mxu0 0.0
    %684 = vmatpush1.msra.mxu0 %v646
    %685 = vmatprep.subr.mxu0 0.0
    %686 = vmatpush1.msra.mxu0 %v647
    %687 = vmatprep.subr.mxu0 0.0
    %688 = vmatpush1.msra.mxu0 0.0
    %689 = vmatprep.subr.mxu0 0.0
    %690 = vmatpush1.msra.mxu0 0.0
    %691 = vmatprep.subr.mxu0 0.0
    %692 = vmatpush1.msra.mxu0 0.0
    %693 = vmatprep.subr.mxu0 0.0
    %694 = vmatpush1.msra.mxu0 0.0
    %695 = vmatprep.subr.mxu0 0.0
    %696 = vmatpush1.msra.mxu0 0.0
    %697 = vmatprep.subr.mxu0 0.0
    %698 = vmatpush1.msra.mxu0 0.0
    %699 = vmatprep.subr.mxu0 0.0
    %700 = vmatpush1.msra.mxu0 0.0
    %701 = vmatprep.subr.mxu0 0.0
    %702 = vmatpush1.msra.mxu0 0.0
    %703 = vmatprep.subr.mxu0 0.0
    %704 = vmatpush1.msra.mxu0 0.0
    %705 = vmatprep.subr.mxu0 0.0
    %706 = vmatpush1.msra.mxu0 0.0
    %707 = vmatprep.subr.mxu0 0.0
    %708 = vmatpush1.msra.mxu0 0.0
    %709 = vmatprep.subr.mxu0 0.0
    %710 = vmatpush1.msra.mxu0 0.0
    %711 = vmatprep.subr.mxu0 0.0
    %712 = vmatpush1.msra.mxu0 0.0
    %713 = vmatprep.subr.mxu0 0.0
    %714 = vmatpush1.msra.mxu0 0.0
    %715 = vmatprep.subr.mxu0 0.0
    %716 = vmatpush1.msra.mxu0 0.0
    %717 = vmatprep.subr.mxu0 0.0
    %718 = vmatpush1.msra.mxu0 0.0
    %719 = vmatprep.mubr.f32.mxu0 0.0
    %720 = vmatmul.mubr.f32.gmra.mrb[0].mxu0 %v631
    %v721 = vpop.f32.mrb[0].mxu0
    %v722 = vadd.f32 %v653, %v721
    %v723 = vpop.f32.mrb[0].mxu0
    %724 = vdwg.mxu0
    %v725 = vmax.f32 %v722, 0.0
    %v726 = vld [vmem:[#allocation13] sm:$0xff]
    %v727 = vld [vmem:[#allocation13 + $0x8] sm:$0xff]
    %v728 = vld [vmem:[#allocation13 + $0x10] sm:$0xff]
    %v729 = vld [vmem:[#allocation13 + $0x18] sm:$0xff]
    %v730 = vld [vmem:[#allocation13 + $0x20] sm:$0xff]
    %v731 = vld [vmem:[#allocation13 + $0x28] sm:$0xff]
    %v732 = vld [vmem:[#allocation13 + $0x30] sm:$0xff]
    %v733 = vld [vmem:[#allocation13 + $0x38] sm:$0xff]
    %v734 = vld [vmem:[#allocation13 + $0x40] sm:$0xff]
    %v735 = vld [vmem:[#allocation13 + $0x48] sm:$0xff]
    %v736 = vld [vmem:[#allocation13 + $0x50] sm:$0xff]
    %v737 = vld [vmem:[#allocation13 + $0x58] sm:$0xff]
    %v738 = vld [vmem:[#allocation13 + $0x60] sm:$0xff]
    %v739 = vld [vmem:[#allocation13 + $0x68] sm:$0xff]
    %v740 = vld [vmem:[#allocation13 + $0x70] sm:$0xff]
    %v741 = vld [vmem:[#allocation13 + $0x78] sm:$0xff]
    %v742 = vld [vmem:[%s12] sm:$0x1]
    %v744 = vlaneseq
    %v745 = vshrl.u32 %v744, 7
    %v746 = vsub.s32 0, %v745
    %v747 = vrot.slane %v742, %v746
    %749 = vmatprep.subr.mxu0 0.0
    %750 = vmatpush1.msra.mxu0 %v726
    %751 = vmatprep.subr.mxu0 0.0
    %752 = vmatpush1.msra.mxu0 %v727
    %753 = vmatprep.subr.mxu0 0.0
    %754 = vmatpush1.msra.mxu0 %v728
    %755 = vmatprep.subr.mxu0 0.0
    %756 = vmatpush1.msra.mxu0 %v729
    %757 = vmatprep.subr.mxu0 0.0
    %758 = vmatpush1.msra.mxu0 %v730
    %759 = vmatprep.subr.mxu0 0.0
    %760 = vmatpush1.msra.mxu0 %v731
    %761 = vmatprep.subr.mxu0 0.0
    %762 = vmatpush1.msra.mxu0 %v732
    %763 = vmatprep.subr.mxu0 0.0
    %764 = vmatpush1.msra.mxu0 %v733
    %765 = vmatprep.subr.mxu0 0.0
    %766 = vmatpush1.msra.mxu0 %v734
    %767 = vmatprep.subr.mxu0 0.0
    %768 = vmatpush1.msra.mxu0 %v735
    %769 = vmatprep.subr.mxu0 0.0
    %770 = vmatpush1.msra.mxu0 %v736
    %771 = vmatprep.subr.mxu0 0.0
    %772 = vmatpush1.msra.mxu0 %v737
    %773 = vmatprep.subr.mxu0 0.0
    %774 = vmatpush1.msra.mxu0 %v738
    %775 = vmatprep.subr.mxu0 0.0
    %776 = vmatpush1.msra.mxu0 %v739
    %777 = vmatprep.subr.mxu0 0.0
    %778 = vmatpush1.msra.mxu0 %v740
    %779 = vmatprep.subr.mxu0 0.0
    %780 = vmatpush1.msra.mxu0 %v741
    %781 = vmatprep.subr.mxu0 0.0
    %782 = vmatpush1.msra.mxu0 0.0
    %783 = vmatprep.subr.mxu0 0.0
    %784 = vmatpush1.msra.mxu0 0.0
    %785 = vmatprep.subr.mxu0 0.0
    %786 = vmatpush1.msra.mxu0 0.0
    %787 = vmatprep.subr.mxu0 0.0
    %788 = vmatpush1.msra.mxu0 0.0
    %789 = vmatprep.subr.mxu0 0.0
    %790 = vmatpush1.msra.mxu0 0.0
    %791 = vmatprep.subr.mxu0 0.0
    %792 = vmatpush1.msra.mxu0 0.0
    %793 = vmatprep.subr.mxu0 0.0
    %794 = vmatpush1.msra.mxu0 0.0
    %795 = vmatprep.subr.mxu0 0.0
    %796 = vmatpush1.msra.mxu0 0.0
    %797 = vmatprep.subr.mxu0 0.0
    %798 = vmatpush1.msra.mxu0 0.0
    %799 = vmatprep.subr.mxu0 0.0
    %800 = vmatpush1.msra.mxu0 0.0
    %801 = vmatprep.subr.mxu0 0.0
    %802 = vmatpush1.msra.mxu0 0.0
    %803 = vmatprep.subr.mxu0 0.0
    %804 = vmatpush1.msra.mxu0 0.0
    %805 = vmatprep.subr.mxu0 0.0
    %806 = vmatpush1.msra.mxu0 0.0
    %807 = vmatprep.subr.mxu0 0.0
    %808 = vmatpush1.msra.mxu0 0.0
    %809 = vmatprep.subr.mxu0 0.0
    %810 = vmatpush1.msra.mxu0 0.0
    %811 = vmatprep.subr.mxu0 0.0
    %812 = vmatpush1.msra.mxu0 0.0
    %813 = vmatprep.mubr.f32.mxu0 0.0
    %814 = vmatmul.mubr.f32.gmra.mrb[0].mxu0 %v725
    %v815 = vpop.f32.mrb[0].mxu0
    %v816 = vadd.f32 %v747, %v815
    %v817 = vpop.f32.mrb[0].mxu0
    %818 = vdwg.mxu0
    %v819 = vxor.u32 %v816, 2147483648
    %v820 = vmul.f32 %v819, 1.442695
    %v821 = vpow.pop %v820
    %v822 = vadd.f32 %v821, 1.0
    %v823 = vrcp.pop %v822
    %v824 = vmul.f32 1.0, %v823
    %v825 = vld [vmem:[#allocation14] sm:$0xff]
    %v826 = vld [vmem:[#allocation14 + $0x8] sm:$0xff]
    %v827 = vld [vmem:[#allocation14 + $0x10] sm:$0xff]
    %v828 = vld [vmem:[#allocation14 + $0x18] sm:$0xff]
    %v829 = vld [vmem:[#allocation14 + $0x20] sm:$0xff]
    %v830 = vld [vmem:[#allocation14 + $0x28] sm:$0xff]
    %v831 = vld [vmem:[#allocation14 + $0x30] sm:$0xff]
    %v832 = vld [vmem:[#allocation14 + $0x38] sm:$0xff]
    %v833 = vld [vmem:[#allocation14 + $0x40] sm:$0xff]
    %v834 = vld [vmem:[#allocation14 + $0x48] sm:$0xff]
    %v835 = vld [vmem:[#allocation14 + $0x50] sm:$0xff]
    %v836 = vld [vmem:[#allocation14 + $0x58] sm:$0xff]
    %v837 = vld [vmem:[#allocation14 + $0x60] sm:$0xff]
    %v838 = vld [vmem:[#allocation14 + $0x68] sm:$0xff]
    %v839 = vld [vmem:[#allocation14 + $0x70] sm:$0xff]
    %v840 = vld [vmem:[#allocation14 + $0x78] sm:$0xff]
    %v841 = vld [vmem:[%s14] sm:$0x1]
    %v843 = vlaneseq
    %v844 = vshrl.u32 %v843, 7
    %v845 = vsub.s32 0, %v844
    %v846 = vrot.slane %v841, %v845
    %848 = vmatprep.subr.mxu0 0.0
    %849 = vmatpush1.msra.mxu0 %v825
    %850 = vmatprep.subr.mxu0 0.0
    %851 = vmatpush1.msra.mxu0 %v826
    %852 = vmatprep.subr.mxu0 0.0
    %853 = vmatpush1.msra.mxu0 %v827
    %854 = vmatprep.subr.mxu0 0.0
    %855 = vmatpush1.msra.mxu0 %v828
    %856 = vmatprep.subr.mxu0 0.0
    %857 = vmatpush1.msra.mxu0 %v829
    %858 = vmatprep.subr.mxu0 0.0
    %859 = vmatpush1.msra.mxu0 %v830
    %860 = vmatprep.subr.mxu0 0.0
    %861 = vmatpush1.msra.mxu0 %v831
    %862 = vmatprep.subr.mxu0 0.0
    %863 = vmatpush1.msra.mxu0 %v832
    %864 = vmatprep.subr.mxu0 0.0
    %865 = vmatpush1.msra.mxu0 %v833
    %866 = vmatprep.subr.mxu0 0.0
    %867 = vmatpush1.msra.mxu0 %v834
    %868 = vmatprep.subr.mxu0 0.0
    %869 = vmatpush1.msra.mxu0 %v835
    %870 = vmatprep.subr.mxu0 0.0
    %871 = vmatpush1.msra.mxu0 %v836
    %872 = vmatprep.subr.mxu0 0.0
    %873 = vmatpush1.msra.mxu0 %v837
    %874 = vmatprep.subr.mxu0 0.0
    %875 = vmatpush1.msra.mxu0 %v838
    %876 = vmatprep.subr.mxu0 0.0
    %877 = vmatpush1.msra.mxu0 %v839
    %878 = vmatprep.subr.mxu0 0.0
    %879 = vmatpush1.msra.mxu0 %v840
    %880 = vmatprep.subr.mxu0 0.0
    %881 = vmatpush1.msra.mxu0 0.0
    %882 = vmatprep.subr.mxu0 0.0
    %883 = vmatpush1.msra.mxu0 0.0
    %884 = vmatprep.subr.mxu0 0.0
    %885 = vmatpush1.msra.mxu0 0.0
    %886 = vmatprep.subr.mxu0 0.0
    %887 = vmatpush1.msra.mxu0 0.0
    %888 = vmatprep.subr.mxu0 0.0
    %889 = vmatpush1.msra.mxu0 0.0
    %890 = vmatprep.subr.mxu0 0.0
    %891 = vmatpush1.msra.mxu0 0.0
    %892 = vmatprep.subr.mxu0 0.0
    %893 = vmatpush1.msra.mxu0 0.0
    %894 = vmatprep.subr.mxu0 0.0
    %895 = vmatpush1.msra.mxu0 0.0
    %896 = vmatprep.subr.mxu0 0.0
    %897 = vmatpush1.msra.mxu0 0.0
    %898 = vmatprep.subr.mxu0 0.0
    %899 = vmatpush1.msra.mxu0 0.0
    %900 = vmatprep.subr.mxu0 0.0
    %901 = vmatpush1.msra.mxu0 0.0
    %902 = vmatprep.subr.mxu0 0.0
    %903 = vmatpush1.msra.mxu0 0.0
    %904 = vmatprep.subr.mxu0 0.0
    %905 = vmatpush1.msra.mxu0 0.0
    %906 = vmatprep.subr.mxu0 0.0
    %907 = vmatpush1.msra.mxu0 0.0
    %908 = vmatprep.subr.mxu0 0.0
    %909 = vmatpush1.msra.mxu0 0.0
    %910 = vmatprep.subr.mxu0 0.0
    %911 = vmatpush1.msra.mxu0 0.0
    %912 = vmatprep.mubr.f32.mxu0 0.0
    %913 = vmatmul.mubr.f32.gmra.mrb[0].mxu0 %v824
    %v914 = vpop.f32.mrb[0].mxu0
    %v915 = vadd.f32 %v846, %v914
    %v916 = vpop.f32.mrb[0].mxu0
    %917 = vdwg.mxu0
    %v918 = vmax.f32 %v915, 0.0
    %v919 = vld [vmem:[#allocation16] sm:$0xff]
    %v920 = vld [vmem:[#allocation16 + $0x8] sm:$0xff]
    %v921 = vld [vmem:[#allocation16 + $0x10] sm:$0xff]
    %v922 = vld [vmem:[#allocation16 + $0x18] sm:$0xff]
    %v923 = vld [vmem:[#allocation16 + $0x20] sm:$0xff]
    %v924 = vld [vmem:[#allocation16 + $0x28] sm:$0xff]
    %v925 = vld [vmem:[#allocation16 + $0x30] sm:$0xff]
    %v926 = vld [vmem:[#allocation16 + $0x38] sm:$0xff]
    %v927 = vld [vmem:[#allocation16 + $0x40] sm:$0xff]
    %v928 = vld [vmem:[#allocation16 + $0x48] sm:$0xff]
    %v929 = vld [vmem:[#allocation16 + $0x50] sm:$0xff]
    %v930 = vld [vmem:[#allocation16 + $0x58] sm:$0xff]
    %v931 = vld [vmem:[#allocation16 + $0x60] sm:$0xff]
    %v932 = vld [vmem:[#allocation16 + $0x68] sm:$0xff]
    %v933 = vld [vmem:[#allocation16 + $0x70] sm:$0xff]
    %v934 = vld [vmem:[#allocation16 + $0x78] sm:$0xff]
    %v935 = vld [vmem:[%s16] sm:$0x1]
    %v937 = vlaneseq
    %v938 = vshrl.u32 %v937, 7
    %v939 = vsub.s32 0, %v938
    %v940 = vrot.slane %v935, %v939
    %942 = vmatprep.subr.mxu0 0.0
    %943 = vmatpush1.msra.mxu0 %v919
    %944 = vmatprep.subr.mxu0 0.0
    %945 = vmatpush1.msra.mxu0 %v920
    %946 = vmatprep.subr.mxu0 0.0
    %947 = vmatpush1.msra.mxu0 %v921
    %948 = vmatprep.subr.mxu0 0.0
    %949 = vmatpush1.msra.mxu0 %v922
    %950 = vmatprep.subr.mxu0 0.0
    %951 = vmatpush1.msra.mxu0 %v923
    %952 = vmatprep.subr.mxu0 0.0
    %953 = vmatpush1.msra.mxu0 %v924
    %954 = vmatprep.subr.mxu0 0.0
    %955 = vmatpush1.msra.mxu0 %v925
    %956 = vmatprep.subr.mxu0 0.0
    %957 = vmatpush1.msra.mxu0 %v926
    %958 = vmatprep.subr.mxu0 0.0
    %959 = vmatpush1.msra.mxu0 %v927
    %960 = vmatprep.subr.mxu0 0.0
    %961 = vmatpush1.msra.mxu0 %v928
    %962 = vmatprep.subr.mxu0 0.0
    %963 = vmatpush1.msra.mxu0 %v929
    %964 = vmatprep.subr.mxu0 0.0
    %965 = vmatpush1.msra.mxu0 %v930
    %966 = vmatprep.subr.mxu0 0.0
    %967 = vmatpush1.msra.mxu0 %v931
    %968 = vmatprep.subr.mxu0 0.0
    %969 = vmatpush1.msra.mxu0 %v932
    %970 = vmatprep.subr.mxu0 0.0
    %971 = vmatpush1.msra.mxu0 %v933
    %972 = vmatprep.subr.mxu0 0.0
    %973 = vmatpush1.msra.mxu0 %v934
    %974 = vmatprep.subr.mxu0 0.0
    %975 = vmatpush1.msra.mxu0 0.0
    %976 = vmatprep.subr.mxu0 0.0
    %977 = vmatpush1.msra.mxu0 0.0
    %978 = vmatprep.subr.mxu0 0.0
    %979 = vmatpush1.msra.mxu0 0.0
    %980 = vmatprep.subr.mxu0 0.0
    %981 = vmatpush1.msra.mxu0 0.0
    %982 = vmatprep.subr.mxu0 0.0
    %983 = vmatpush1.msra.mxu0 0.0
    %984 = vmatprep.subr.mxu0 0.0
    %985 = vmatpush1.msra.mxu0 0.0
    %986 = vmatprep.subr.mxu0 0.0
    %987 = vmatpush1.msra.mxu0 0.0
    %988 = vmatprep.subr.mxu0 0.0
    %989 = vmatpush1.msra.mxu0 0.0
    %990 = vmatprep.subr.mxu0 0.0
    %991 = vmatpush1.msra.mxu0 0.0
    %992 = vmatprep.subr.mxu0 0.0
    %993 = vmatpush1.msra.mxu0 0.0
    %994 = vmatprep.subr.mxu0 0.0
    %995 = vmatpush1.msra.mxu0 0.0
    %996 = vmatprep.subr.mxu0 0.0
    %997 = vmatpush1.msra.mxu0 0.0
    %998 = vmatprep.subr.mxu0 0.0
    %999 = vmatpush1.msra.mxu0 0.0
    %1000 = vmatprep.subr.mxu0 0.0
    %1001 = vmatpush1.msra.mxu0 0.0
    %1002 = vmatprep.subr.mxu0 0.0
    %1003 = vmatpush1.msra.mxu0 0.0
    %1004 = vmatprep.subr.mxu0 0.0
    %1005 = vmatpush1.msra.mxu0 0.0
    %1006 = vmatprep.mubr.f32.mxu0 0.0
    %1007 = vmatmul.mubr.f32.gmra.mrb[0].mxu0 %v918
    %v1008 = vpop.f32.mrb[0].mxu0
    %v1009 = vadd.f32 %v940, %v1008
    %v1010 = vpop.f32.mrb[0].mxu0
    %1011 = vdwg.mxu0
    %v1012 = vmax.f32 %v1009, 0.0
    %v1013 = vld [vmem:[#allocation17] sm:$0xff]
    %v1014 = vld [vmem:[#allocation17 + $0x8] sm:$0xff]
    %v1015 = vld [vmem:[#allocation17 + $0x10] sm:$0xff]
    %v1016 = vld [vmem:[#allocation17 + $0x18] sm:$0xff]
    %v1017 = vld [vmem:[#allocation17 + $0x20] sm:$0xff]
    %v1018 = vld [vmem:[#allocation17 + $0x28] sm:$0xff]
    %v1019 = vld [vmem:[#allocation17 + $0x30] sm:$0xff]
    %v1020 = vld [vmem:[#allocation17 + $0x38] sm:$0xff]
    %v1021 = vld [vmem:[#allocation17 + $0x40] sm:$0xff]
    %v1022 = vld [vmem:[#allocation17 + $0x48] sm:$0xff]
    %v1023 = vld [vmem:[#allocation17 + $0x50] sm:$0xff]
    %v1024 = vld [vmem:[#allocation17 + $0x58] sm:$0xff]
    %v1025 = vld [vmem:[#allocation17 + $0x60] sm:$0xff]
    %v1026 = vld [vmem:[#allocation17 + $0x68] sm:$0xff]
    %v1027 = vld [vmem:[#allocation17 + $0x70] sm:$0xff]
    %v1028 = vld [vmem:[#allocation17 + $0x78] sm:$0xff]
    %v1029 = vld [vmem:[%s18] sm:$0x1]
    %v1031 = vlaneseq
    %v1032 = vshrl.u32 %v1031, 7
    %v1033 = vsub.s32 0, %v1032
    %v1034 = vrot.slane %v1029, %v1033
    %1036 = vmatprep.subr.mxu0 0.0
    %1037 = vmatpush1.msra.mxu0 %v1013
    %1038 = vmatprep.subr.mxu0 0.0
    %1039 = vmatpush1.msra.mxu0 %v1014
    %1040 = vmatprep.subr.mxu0 0.0
    %1041 = vmatpush1.msra.mxu0 %v1015
    %1042 = vmatprep.subr.mxu0 0.0
    %1043 = vmatpush1.msra.mxu0 %v1016
    %1044 = vmatprep.subr.mxu0 0.0
    %1045 = vmatpush1.msra.mxu0 %v1017
    %1046 = vmatprep.subr.mxu0 0.0
    %1047 = vmatpush1.msra.mxu0 %v1018
    %1048 = vmatprep.subr.mxu0 0.0
    %1049 = vmatpush1.msra.mxu0 %v1019
    %1050 = vmatprep.subr.mxu0 0.0
    %1051 = vmatpush1.msra.mxu0 %v1020
    %1052 = vmatprep.subr.mxu0 0.0
    %1053 = vmatpush1.msra.mxu0 %v1021
    %1054 = vmatprep.subr.mxu0 0.0
    %1055 = vmatpush1.msra.mxu0 %v1022
    %1056 = vmatprep.subr.mxu0 0.0
    %1057 = vmatpush1.msra.mxu0 %v1023
    %1058 = vmatprep.subr.mxu0 0.0
    %1059 = vmatpush1.msra.mxu0 %v1024
    %1060 = vmatprep.subr.mxu0 0.0
    %1061 = vmatpush1.msra.mxu0 %v1025
    %1062 = vmatprep.subr.mxu0 0.0
    %1063 = vmatpush1.msra.mxu0 %v1026
    %1064 = vmatprep.subr.mxu0 0.0
    %1065 = vmatpush1.msra.mxu0 %v1027
    %1066 = vmatprep.subr.mxu0 0.0
    %1067 = vmatpush1.msra.mxu0 %v1028
    %1068 = vmatprep.subr.mxu0 0.0
    %1069 = vmatpush1.msra.mxu0 0.0
    %1070 = vmatprep.subr.mxu0 0.0
    %1071 = vmatpush1.msra.mxu0 0.0
    %1072 = vmatprep.subr.mxu0 0.0
    %1073 = vmatpush1.msra.mxu0 0.0
    %1074 = vmatprep.subr.mxu0 0.0
    %1075 = vmatpush1.msra.mxu0 0.0
    %1076 = vmatprep.subr.mxu0 0.0
    %1077 = vmatpush1.msra.mxu0 0.0
    %1078 = vmatprep.subr.mxu0 0.0
    %1079 = vmatpush1.msra.mxu0 0.0
    %1080 = vmatprep.subr.mxu0 0.0
    %1081 = vmatpush1.msra.mxu0 0.0
    %1082 = vmatprep.subr.mxu0 0.0
    %1083 = vmatpush1.msra.mxu0 0.0
    %1084 = vmatprep.subr.mxu0 0.0
    %1085 = vmatpush1.msra.mxu0 0.0
    %1086 = vmatprep.subr.mxu0 0.0
    %1087 = vmatpush1.msra.mxu0 0.0
    %1088 = vmatprep.subr.mxu0 0.0
    %1089 = vmatpush1.msra.mxu0 0.0
    %1090 = vmatprep.subr.mxu0 0.0
    %1091 = vmatpush1.msra.mxu0 0.0
    %1092 = vmatprep.subr.mxu0 0.0
    %1093 = vmatpush1.msra.mxu0 0.0
    %1094 = vmatprep.subr.mxu0 0.0
    %1095 = vmatpush1.msra.mxu0 0.0
    %1096 = vmatprep.subr.mxu0 0.0
    %1097 = vmatpush1.msra.mxu0 0.0
    %1098 = vmatprep.subr.mxu0 0.0
    %1099 = vmatpush1.msra.mxu0 0.0
    %1100 = vmatprep.mubr.f32.mxu0 0.0
    %1101 = vmatmul.mubr.f32.gmra.mrb[0].mxu0 %v1012
    %v1102 = vpop.f32.mrb[0].mxu0
    %v1103 = vadd.f32 %v1034, %v1102
    %v1104 = vpop.f32.mrb[0].mxu0
    %1105 = vdwg.mxu0
    %v1106 = vmax.f32 %v1103, 0.0
    %v1107 = vld [vmem:[#allocation19] sm:$0xff]
    %v1108 = vld [vmem:[#allocation19 + $0x8] sm:$0xff]
    %v1109 = vld [vmem:[#allocation19 + $0x10] sm:$0xff]
    %v1110 = vld [vmem:[#allocation19 + $0x18] sm:$0xff]
    %v1111 = vld [vmem:[#allocation19 + $0x20] sm:$0xff]
    %v1112 = vld [vmem:[#allocation19 + $0x28] sm:$0xff]
    %v1113 = vld [vmem:[#allocation19 + $0x30] sm:$0xff]
    %v1114 = vld [vmem:[#allocation19 + $0x38] sm:$0xff]
    %v1115 = vld [vmem:[#allocation19 + $0x40] sm:$0xff]
    %v1116 = vld [vmem:[#allocation19 + $0x48] sm:$0xff]
    %v1117 = vld [vmem:[#allocation19 + $0x50] sm:$0xff]
    %v1118 = vld [vmem:[#allocation19 + $0x58] sm:$0xff]
    %v1119 = vld [vmem:[#allocation19 + $0x60] sm:$0xff]
    %v1120 = vld [vmem:[#allocation19 + $0x68] sm:$0xff]
    %v1121 = vld [vmem:[#allocation19 + $0x70] sm:$0xff]
    %v1122 = vld [vmem:[#allocation19 + $0x78] sm:$0xff]
    %v1123 = vld [vmem:[%s20] sm:$0x1]
    %v1125 = vlaneseq
    %v1126 = vshrl.u32 %v1125, 7
    %v1127 = vsub.s32 0, %v1126
    %v1128 = vrot.slane %v1123, %v1127
    %1130 = vmatprep.subr.mxu0 0.0
    %1131 = vmatpush1.msra.mxu0 %v1107
    %1132 = vmatprep.subr.mxu0 0.0
    %1133 = vmatpush1.msra.mxu0 %v1108
    %1134 = vmatprep.subr.mxu0 0.0
    %1135 = vmatpush1.msra.mxu0 %v1109
    %1136 = vmatprep.subr.mxu0 0.0
    %1137 = vmatpush1.msra.mxu0 %v1110
    %1138 = vmatprep.subr.mxu0 0.0
    %1139 = vmatpush1.msra.mxu0 %v1111
    %1140 = vmatprep.subr.mxu0 0.0
    %1141 = vmatpush1.msra.mxu0 %v1112
    %1142 = vmatprep.subr.mxu0 0.0
    %1143 = vmatpush1.msra.mxu0 %v1113
    %1144 = vmatprep.subr.mxu0 0.0
    %1145 = vmatpush1.msra.mxu0 %v1114
    %1146 = vmatprep.subr.mxu0 0.0
    %1147 = vmatpush1.msra.mxu0 %v1115
    %1148 = vmatprep.subr.mxu0 0.0
    %1149 = vmatpush1.msra.mxu0 %v1116
    %1150 = vmatprep.subr.mxu0 0.0
    %1151 = vmatpush1.msra.mxu0 %v1117
    %1152 = vmatprep.subr.mxu0 0.0
    %1153 = vmatpush1.msra.mxu0 %v1118
    %1154 = vmatprep.subr.mxu0 0.0
    %1155 = vmatpush1.msra.mxu0 %v1119
    %1156 = vmatprep.subr.mxu0 0.0
    %1157 = vmatpush1.msra.mxu0 %v1120
    %1158 = vmatprep.subr.mxu0 0.0
    %1159 = vmatpush1.msra.mxu0 %v1121
    %1160 = vmatprep.subr.mxu0 0.0
    %1161 = vmatpush1.msra.mxu0 %v1122
    %1162 = vmatprep.subr.mxu0 0.0
    %1163 = vmatpush1.msra.mxu0 0.0
    %1164 = vmatprep.subr.mxu0 0.0
    %1165 = vmatpush1.msra.mxu0 0.0
    %1166 = vmatprep.subr.mxu0 0.0
    %1167 = vmatpush1.msra.mxu0 0.0
    %1168 = vmatprep.subr.mxu0 0.0
    %1169 = vmatpush1.msra.mxu0 0.0
    %1170 = vmatprep.subr.mxu0 0.0
    %1171 = vmatpush1.msra.mxu0 0.0
    %1172 = vmatprep.subr.mxu0 0.0
    %1173 = vmatpush1.msra.mxu0 0.0
    %1174 = vmatprep.subr.mxu0 0.0
    %1175 = vmatpush1.msra.mxu0 0.0
    %1176 = vmatprep.subr.mxu0 0.0
    %1177 = vmatpush1.msra.mxu0 0.0
    %1178 = vmatprep.subr.mxu0 0.0
    %1179 = vmatpush1.msra.mxu0 0.0
    %1180 = vmatprep.subr.mxu0 0.0
    %1181 = vmatpush1.msra.mxu0 0.0
    %1182 = vmatprep.subr.mxu0 0.0
    %1183 = vmatpush1.msra.mxu0 0.0
    %1184 = vmatprep.subr.mxu0 0.0
    %1185 = vmatpush1.msra.mxu0 0.0
    %1186 = vmatprep.subr.mxu0 0.0
    %1187 = vmatpush1.msra.mxu0 0.0
    %1188 = vmatprep.subr.mxu0 0.0
    %1189 = vmatpush1.msra.mxu0 0.0
    %1190 = vmatprep.subr.mxu0 0.0
    %1191 = vmatpush1.msra.mxu0 0.0
    %1192 = vmatprep.subr.mxu0 0.0
    %1193 = vmatpush1.msra.mxu0 0.0
    %1194 = vmatprep.mubr.f32.mxu0 0.0
    %1195 = vmatmul.mubr.f32.gmra.mrb[0].mxu0 %v1106
    %v1196 = vpop.f32.mrb[0].mxu0
    %v1197 = vadd.f32 %v1128, %v1196
    %v1198 = vpop.f32.mrb[0].mxu0
    %1199 = vdwg.mxu0
    %v1200 = vmax.f32 %v1197, 0.0
    %v1201 = vld [vmem:[#allocation20] sm:$0xff]
    %v1202 = vld [vmem:[#allocation20 + $0x8] sm:$0xff]
    %v1203 = vld [vmem:[#allocation20 + $0x10] sm:$0xff]
    %v1204 = vld [vmem:[#allocation20 + $0x18] sm:$0xff]
    %v1205 = vld [vmem:[#allocation20 + $0x20] sm:$0xff]
    %v1206 = vld [vmem:[#allocation20 + $0x28] sm:$0xff]
    %v1207 = vld [vmem:[#allocation20 + $0x30] sm:$0xff]
    %v1208 = vld [vmem:[#allocation20 + $0x38] sm:$0xff]
    %v1209 = vld [vmem:[#allocation20 + $0x40] sm:$0xff]
    %v1210 = vld [vmem:[#allocation20 + $0x48] sm:$0xff]
    %v1211 = vld [vmem:[#allocation20 + $0x50] sm:$0xff]
    %v1212 = vld [vmem:[#allocation20 + $0x58] sm:$0xff]
    %v1213 = vld [vmem:[#allocation20 + $0x60] sm:$0xff]
    %v1214 = vld [vmem:[#allocation20 + $0x68] sm:$0xff]
    %v1215 = vld [vmem:[#allocation20 + $0x70] sm:$0xff]
    %v1216 = vld [vmem:[#allocation20 + $0x78] sm:$0xff]
    %v1217 = vld [vmem:[%s22] sm:$0x1]
    %v1219 = vlaneseq
    %v1220 = vshrl.u32 %v1219, 7
    %v1221 = vsub.s32 0, %v1220
    %v1222 = vrot.slane %v1217, %v1221
    %1224 = vmatprep.subr.mxu0 0.0
    %1225 = vmatpush1.msra.mxu0 %v1201
    %1226 = vmatprep.subr.mxu0 0.0
    %1227 = vmatpush1.msra.mxu0 %v1202
    %1228 = vmatprep.subr.mxu0 0.0
    %1229 = vmatpush1.msra.mxu0 %v1203
    %1230 = vmatprep.subr.mxu0 0.0
    %1231 = vmatpush1.msra.mxu0 %v1204
    %1232 = vmatprep.subr.mxu0 0.0
    %1233 = vmatpush1.msra.mxu0 %v1205
    %1234 = vmatprep.subr.mxu0 0.0
    %1235 = vmatpush1.msra.mxu0 %v1206
    %1236 = vmatprep.subr.mxu0 0.0
    %1237 = vmatpush1.msra.mxu0 %v1207
    %1238 = vmatprep.subr.mxu0 0.0
    %1239 = vmatpush1.msra.mxu0 %v1208
    %1240 = vmatprep.subr.mxu0 0.0
    %1241 = vmatpush1.msra.mxu0 %v1209
    %1242 = vmatprep.subr.mxu0 0.0
    %1243 = vmatpush1.msra.mxu0 %v1210
    %1244 = vmatprep.subr.mxu0 0.0
    %1245 = vmatpush1.msra.mxu0 %v1211
    %1246 = vmatprep.subr.mxu0 0.0
    %1247 = vmatpush1.msra.mxu0 %v1212
    %1248 = vmatprep.subr.mxu0 0.0
    %1249 = vmatpush1.msra.mxu0 %v1213
    %1250 = vmatprep.subr.mxu0 0.0
    %1251 = vmatpush1.msra.mxu0 %v1214
    %1252 = vmatprep.subr.mxu0 0.0
    %1253 = vmatpush1.msra.mxu0 %v1215
    %1254 = vmatprep.subr.mxu0 0.0
    %1255 = vmatpush1.msra.mxu0 %v1216
    %1256 = vmatprep.subr.mxu0 0.0
    %1257 = vmatpush1.msra.mxu0 0.0
    %1258 = vmatprep.subr.mxu0 0.0
    %1259 = vmatpush1.msra.mxu0 0.0
    %1260 = vmatprep.subr.mxu0 0.0
    %1261 = vmatpush1.msra.mxu0 0.0
    %1262 = vmatprep.subr.mxu0 0.0
    %1263 = vmatpush1.msra.mxu0 0.0
    %1264 = vmatprep.subr.mxu0 0.0
    %1265 = vmatpush1.msra.mxu0 0.0
    %1266 = vmatprep.subr.mxu0 0.0
    %1267 = vmatpush1.msra.mxu0 0.0
    %1268 = vmatprep.subr.mxu0 0.0
    %1269 = vmatpush1.msra.mxu0 0.0
    %1270 = vmatprep.subr.mxu0 0.0
    %1271 = vmatpush1.msra.mxu0 0.0
    %1272 = vmatprep.subr.mxu0 0.0
    %1273 = vmatpush1.msra.mxu0 0.0
    %1274 = vmatprep.subr.mxu0 0.0
    %1275 = vmatpush1.msra.mxu0 0.0
    %1276 = vmatprep.subr.mxu0 0.0
    %1277 = vmatpush1.msra.mxu0 0.0
    %1278 = vmatprep.subr.mxu0 0.0
    %1279 = vmatpush1.msra.mxu0 0.0
    %1280 = vmatprep.subr.mxu0 0.0
    %1281 = vmatpush1.msra.mxu0 0.0
    %1282 = vmatprep.subr.mxu0 0.0
    %1283 = vmatpush1.msra.mxu0 0.0
    %1284 = vmatprep.subr.mxu0 0.0
    %1285 = vmatpush1.msra.mxu0 0.0
    %1286 = vmatprep.subr.mxu0 0.0
    %1287 = vmatpush1.msra.mxu0 0.0
    %1288 = vmatprep.mubr.f32.mxu0 0.0
    %1289 = vmatmul.mubr.f32.gmra.mrb[0].mxu0 %v1200
    %v1290 = vpop.f32.mrb[0].mxu0
    %v1291 = vadd.f32 %v1222, %v1290
    %v1292 = vpop.f32.mrb[0].mxu0
    %1293 = vdwg.mxu0
    %v1294 = vmax.f32 %v1291, 0.0
    %v1295 = vld [vmem:[#allocation22] sm:$0xff]
    %v1296 = vld [vmem:[#allocation22 + $0x8] sm:$0xff]
    %v1297 = vld [vmem:[#allocation22 + $0x10] sm:$0xff]
    %v1298 = vld [vmem:[#allocation22 + $0x18] sm:$0xff]
    %v1299 = vld [vmem:[#allocation22 + $0x20] sm:$0xff]
    %v1300 = vld [vmem:[#allocation22 + $0x28] sm:$0xff]
    %v1301 = vld [vmem:[#allocation22 + $0x30] sm:$0xff]
    %v1302 = vld [vmem:[#allocation22 + $0x38] sm:$0xff]
    %v1303 = vld [vmem:[#allocation22 + $0x40] sm:$0xff]
    %v1304 = vld [vmem:[#allocation22 + $0x48] sm:$0xff]
    %v1305 = vld [vmem:[#allocation22 + $0x50] sm:$0xff]
    %v1306 = vld [vmem:[#allocation22 + $0x58] sm:$0xff]
    %v1307 = vld [vmem:[#allocation22 + $0x60] sm:$0xff]
    %v1308 = vld [vmem:[#allocation22 + $0x68] sm:$0xff]
    %v1309 = vld [vmem:[#allocation22 + $0x70] sm:$0xff]
    %v1310 = vld [vmem:[#allocation22 + $0x78] sm:$0xff]
    %v1311 = vld [vmem:[%s24] sm:$0x1]
    %v1313 = vlaneseq
    %v1314 = vshrl.u32 %v1313, 7
    %v1315 = vsub.s32 0, %v1314
    %v1316 = vrot.slane %v1311, %v1315
    %1318 = vmatprep.subr.mxu0 0.0
    %1319 = vmatpush1.msra.mxu0 %v1295
    %1320 = vmatprep.subr.mxu0 0.0
    %1321 = vmatpush1.msra.mxu0 %v1296
    %1322 = vmatprep.subr.mxu0 0.0
    %1323 = vmatpush1.msra.mxu0 %v1297
    %1324 = vmatprep.subr.mxu0 0.0
    %1325 = vmatpush1.msra.mxu0 %v1298
    %1326 = vmatprep.subr.mxu0 0.0
    %1327 = vmatpush1.msra.mxu0 %v1299
    %1328 = vmatprep.subr.mxu0 0.0
    %1329 = vmatpush1.msra.mxu0 %v1300
    %1330 = vmatprep.subr.mxu0 0.0
    %1331 = vmatpush1.msra.mxu0 %v1301
    %1332 = vmatprep.subr.mxu0 0.0
    %1333 = vmatpush1.msra.mxu0 %v1302
    %1334 = vmatprep.subr.mxu0 0.0
    %1335 = vmatpush1.msra.mxu0 %v1303
    %1336 = vmatprep.subr.mxu0 0.0
    %1337 = vmatpush1.msra.mxu0 %v1304
    %1338 = vmatprep.subr.mxu0 0.0
    %1339 = vmatpush1.msra.mxu0 %v1305
    %1340 = vmatprep.subr.mxu0 0.0
    %1341 = vmatpush1.msra.mxu0 %v1306
    %1342 = vmatprep.subr.mxu0 0.0
    %1343 = vmatpush1.msra.mxu0 %v1307
    %1344 = vmatprep.subr.mxu0 0.0
    %1345 = vmatpush1.msra.mxu0 %v1308
    %1346 = vmatprep.subr.mxu0 0.0
    %1347 = vmatpush1.msra.mxu0 %v1309
    %1348 = vmatprep.subr.mxu0 0.0
    %1349 = vmatpush1.msra.mxu0 %v1310
    %1350 = vmatprep.subr.mxu0 0.0
    %1351 = vmatpush1.msra.mxu0 0.0
    %1352 = vmatprep.subr.mxu0 0.0
    %1353 = vmatpush1.msra.mxu0 0.0
    %1354 = vmatprep.subr.mxu0 0.0
    %1355 = vmatpush1.msra.mxu0 0.0
    %1356 = vmatprep.subr.mxu0 0.0
    %1357 = vmatpush1.msra.mxu0 0.0
    %1358 = vmatprep.subr.mxu0 0.0
    %1359 = vmatpush1.msra.mxu0 0.0
    %1360 = vmatprep.subr.mxu0 0.0
    %1361 = vmatpush1.msra.mxu0 0.0
    %1362 = vmatprep.subr.mxu0 0.0
    %1363 = vmatpush1.msra.mxu0 0.0
    %1364 = vmatprep.subr.mxu0 0.0
    %1365 = vmatpush1.msra.mxu0 0.0
    %1366 = vmatprep.subr.mxu0 0.0
    %1367 = vmatpush1.msra.mxu0 0.0
    %1368 = vmatprep.subr.mxu0 0.0
    %1369 = vmatpush1.msra.mxu0 0.0
    %1370 = vmatprep.subr.mxu0 0.0
    %1371 = vmatpush1.msra.mxu0 0.0
    %1372 = vmatprep.subr.mxu0 0.0
    %1373 = vmatpush1.msra.mxu0 0.0
    %1374 = vmatprep.subr.mxu0 0.0
    %1375 = vmatpush1.msra.mxu0 0.0
    %1376 = vmatprep.subr.mxu0 0.0
    %1377 = vmatpush1.msra.mxu0 0.0
    %1378 = vmatprep.subr.mxu0 0.0
    %1379 = vmatpush1.msra.mxu0 0.0
    %1380 = vmatprep.subr.mxu0 0.0
    %1381 = vmatpush1.msra.mxu0 0.0
    %1382 = vmatprep.mubr.f32.mxu0 0.0
    %1383 = vmatmul.mubr.f32.gmra.mrb[0].mxu0 %v1294
    %v1384 = vpop.f32.mrb[0].mxu0
    %v1385 = vadd.f32 %v1316, %v1384
    %v1386 = vpop.f32.mrb[0].mxu0
    %1387 = vdwg.mxu0
    %1388 = vst [vmem:[#allocation23] sm:$0xff] %v1385
    // Predicated region
    $region154: #{tpu_custom_call.1} parent=1 // pred_check
      _
    $region155: #{tpu_custom_call.1} parent=1 // pred_check_branch
      %1390 = sbr.rel (0) target = $region157
    $region156: #{tpu_custom_call.1} parent=1 // pred_region
      %s1392 = ssub.s32 128, 128
      %1393 = vsyncadd [#allocation4], %s1392
      %s1395 = sshll.u32 [#allocation23], 4
      %s1396 = int_to_ptr.vmem [resolvable:$true] %s1395
      %1398 = dma.vmem_to_hbm [thread:$0]  %s1396, 128, %s25, [#allocation4]
    $region157: #{tpu_custom_call.1} parent=1 // pred_fallthru
      _
    // Predicated region
    $region158: #{tpu_custom_call.1} parent=1 // pred_check
      _
    $region159: #{tpu_custom_call.1} parent=1 // pred_check_branch
      %1400 = sbr.rel (0) target = $region161
    $region160: #{tpu_custom_call.1} parent=1 // pred_region
      %1401 = dma.done [#allocation4], 128
    $region161: #{tpu_custom_call.1} parent=1 // pred_fallthru
      _
    %1402 = vsyncpa [#allocation3], 1
    %1403 = vsyncpa [#allocation6], 1
    %1404 = vsyncpa [#allocation9], 1
    %1405 = vsyncpa [#allocation12], 1
    %1406 = vsyncpa [#allocation15], 1
    %1407 = vsyncpa [#allocation18], 1
    %1408 = vsyncpa [#allocation21], 1
    %1409 = vsyncpa [#allocation4], 1

</llo_original>
